<compile_context>
chip_gen: v7x
topology: tpu7x:2x2x1
jax: 0.10.0
libtpu: 0.0.40
codegen_flags: <defaults>
</compile_context>

<pallas_src>
import functools

import jax
import jax.numpy as jnp
from jax.experimental import pallas as pl
from jax.experimental.pallas import tpu as pltpu

_LN_EPS = 1e-5
_DEFAULT_ROW_TILE = 512        # 512-1024 amortizes per-step overhead / HBM roofline
_MIN_GRID_STEPS = 4            # v7x: 2 TCs * >=2 steps each for intra-core overlap
_VMEM_SOFT_LIMIT = 24 * 1024 * 1024
_VMEM_HARD_CAP = 64 * 1024 * 1024   # v7x physical VMEM per TensorCore


# ------------------------------- kernels -------------------------------

def _layernorm_f32(x):
    xf = x.astype(jnp.float32)
    mu = jnp.mean(xf, axis=-1, keepdims=True)
    xc = xf - mu
    var = jnp.mean(xc * xc, axis=-1, keepdims=True)
    return xc * jax.lax.rsqrt(var + _LN_EPS)


def _ln_project_kernel(x_ref, w_ref, b_ref, o_ref, *, mxu_dtype):
    # x_ref: (T, F)   w_ref: (F, N) bf16   b_ref: (1, N) f32   o_ref: (T, N)
    xn = _layernorm_f32(x_ref[...])
    y = jnp.dot(xn.astype(mxu_dtype), w_ref[...], preferred_element_type=jnp.float32)
    o_ref[...] = (y + b_ref[...]).astype(o_ref.dtype)


def _ln_project_two_stream_kernel(xq_ref, xm_ref, qw_ref, qb_ref, kvw_ref,
                                  q_ref, kv_ref, *, mxu_dtype):
    # One grid step handles one q-row tile AND one m-row tile (single pallas_call).
    qn = _layernorm_f32(xq_ref[...])
    q = jnp.dot(qn.astype(mxu_dtype), qw_ref[...], preferred_element_type=jnp.float32)
    q_ref[...] = (q + qb_ref[...]).astype(q_ref.dtype)

    mn = _layernorm_f32(xm_ref[...])
    kv = jnp.dot(mn.astype(mxu_dtype), kvw_ref[...], preferred_element_type=jnp.float32)
    kv_ref[...] = kv.astype(kv_ref.dtype)


# ------------------------------- helpers -------------------------------

def _choose_row_tile(rows, target, align):
    """Largest multiple-of-`align` tile <= target dividing `rows` exactly (no pad),
    capped so the grid keeps >= _MIN_GRID_STEPS steps when rows allow (v7x)."""
    target = min(target, rows)
    if rows >= _MIN_GRID_STEPS * 8 * align and rows // target < _MIN_GRID_STEPS:
        target = rows // _MIN_GRID_STEPS
    t = (min(target, rows) // align) * align
    while t >= align:
        if rows % t == 0:
            return t
        t -= align
    return rows  # ragged row count: single full-extent block (still no padding)


def _const_spec(shape, single_buffer):
    idx = lambda *_: (0,) * len(shape)
    if single_buffer:
        # Constant block index -> never re-fetched; second pipeline buffer is dead VMEM.
        return pl.BlockSpec(shape, idx, pipeline_mode=pl.Buffered(1))
    return pl.BlockSpec(shape, idx)


def _vmem_limit(bytes_needed):
    if bytes_needed <= _VMEM_SOFT_LIMIT:
        return None  # default scoped limit is plenty
    return int(min(2 * bytes_needed, _VMEM_HARD_CAP))


def _itemsize(dt):
    return jnp.dtype(dt).itemsize


# ------------------------------- pallas_call wrappers -------------------------------

def _ln_project(x2d, w, b, out_dtype, *, mxu_dtype, row_tile):
    """out[r, :] = LN_f32(x2d[r, :]) @ w + b   (single fused LN+matmul per tile)."""
    rows, feat = x2d.shape
    n = w.shape[1]
    align = 8 if _itemsize(x2d.dtype) == 4 else 16
    tile = _choose_row_tile(rows, row_tile, align)
    grid = rows // tile

    out_isz = _itemsize(out_dtype)
    cost = pl.CostEstimate(
        flops=int(2 * rows * feat * n + 8 * rows * feat),
        transcendentals=int(rows),
        bytes_accessed=int(x2d.size * _itemsize(x2d.dtype)
                           + w.size * _itemsize(w.dtype)
                           + b.size * _itemsize(b.dtype)
                           + rows * n * out_isz),
    )
    vmem_need = int(2 * tile * (feat * _itemsize(x2d.dtype) + n * out_isz)
                    + 2 * (w.size * _itemsize(w.dtype) + b.size * _itemsize(b.dtype)))
    params = pltpu.CompilerParams(dimension_semantics=("parallel",),
                                  vmem_limit_bytes=_vmem_limit(vmem_need))
    kernel = functools.partial(_ln_project_kernel, mxu_dtype=mxu_dtype)

    def run(single_buffer):
        return pl.pallas_call(
            kernel,
            out_shape=jax.ShapeDtypeStruct((rows, n), out_dtype),
            grid_spec=pltpu.PrefetchScalarGridSpec(
                num_scalar_prefetch=0,
                grid=(grid,),
                in_specs=[
                    pl.BlockSpec((tile, feat), lambda r: (r, 0)),
                    _const_spec((feat, n), single_buffer),
                    _const_spec((1, n), single_buffer),
                ],
                out_specs=pl.BlockSpec((tile, n), lambda r: (r, 0)),
            ),
            compiler_params=params,
            cost_estimate=cost,
        )(x2d, w, b)

    try:
        return run(True)
    except Exception:  # pl.Buffered(1) unsupported on this build -> plain specs
        return run(False)


def _ln_project_two_stream(xq, xm, qw, qb, kvw, q_dtype, kv_dtype, *, mxu_dtype, row_tile):
    """Single pallas_call producing the q slab and the concatenated k|v slab."""
    rows, a = xq.shape
    rows_m, m = xm.shape
    assert rows == rows_m
    nq = qw.shape[1]
    nkv = kvw.shape[1]
    align = 8 if (_itemsize(xq.dtype) == 4 and _itemsize(xm.dtype) == 4) else 16
    tile = _choose_row_tile(rows, row_tile, align)
    grid = rows // tile

    q_isz, kv_isz = _itemsize(q_dtype), _itemsize(kv_dtype)
    cost = pl.CostEstimate(
        flops=int(2 * rows * (a * nq + m * nkv) + 8 * rows * (a + m)),
        transcendentals=int(2 * rows),
        bytes_accessed=int(xq.size * _itemsize(xq.dtype) + xm.size * _itemsize(xm.dtype)
                           + qw.size * _itemsize(qw.dtype) + qb.size * _itemsize(qb.dtype)
                           + kvw.size * _itemsize(kvw.dtype)
                           + rows * (nq * q_isz + nkv * kv_isz)),
    )
    vmem_need = int(2 * tile * (a * _itemsize(xq.dtype) + m * _itemsize(xm.dtype)
                                + nq * q_isz + nkv * kv_isz)
                    + 2 * (qw.size * _itemsize(qw.dtype) + qb.size * 4
                           + kvw.size * _itemsize(kvw.dtype)))
    params = pltpu.CompilerParams(dimension_semantics=("parallel",),
                                  vmem_limit_bytes=_vmem_limit(vmem_need))
    kernel = functools.partial(_ln_project_two_stream_kernel, mxu_dtype=mxu_dtype)

    def run(single_buffer):
        return pl.pallas_call(
            kernel,
            out_shape=(
                jax.ShapeDtypeStruct((rows, nq), q_dtype),
                jax.ShapeDtypeStruct((rows, nkv), kv_dtype),
            ),
            grid_spec=pltpu.PrefetchScalarGridSpec(
                num_scalar_prefetch=0,
                grid=(grid,),
                in_specs=[
                    pl.BlockSpec((tile, a), lambda r: (r, 0)),
                    pl.BlockSpec((tile, m), lambda r: (r, 0)),
                    _const_spec((a, nq), single_buffer),
                    _const_spec((1, nq), single_buffer),
                    _const_spec((m, nkv), single_buffer),
                ],
                out_specs=[
                    pl.BlockSpec((tile, nq), lambda r: (r, 0)),
                    pl.BlockSpec((tile, nkv), lambda r: (r, 0)),
                ],
            ),
            compiler_params=params,
            cost_estimate=cost,
        )(xq, xm, qw, qb, kvw)

    try:
        return run(True)
    except Exception:  # pl.Buffered(1) unsupported on this build -> plain specs
        return run(False)


# ------------------------------- public entry point -------------------------------

def self_attention1_qkv(q_data, m_data, query_w, query_b, key_w, value_w,
                        *, mxu_dtype=jnp.bfloat16, row_tile=_DEFAULT_ROW_TILE):
    """Returns (q, k, v) exactly as SelfAttention1.forward does (early-return path)."""
    B, Q, A = q_data.shape
    Bm, K, M = m_data.shape
    assert Bm == B
    _, H, C = query_w.shape
    Cv = value_w.shape[2]
    scale = float(C) ** -0.5
    q_dtype, kv_dtype = q_data.dtype, m_data.dtype

    # Fold key_dim**-0.5 into the query weights/bias; narrow MXU operands to bf16.
    qw = (query_w.reshape(A, H * C).astype(jnp.float32) * scale).astype(mxu_dtype)
    qb = query_b.reshape(1, H * C).astype(jnp.float32) * scale
    kvw = jnp.concatenate(
        [key_w.reshape(M, H * C), value_w.reshape(M, H * Cv)], axis=1
    ).astype(mxu_dtype)

    if q_data is m_data:
        # Fully fused fast path: one LayerNorm + one (A, 2*H*C + H*Cv) matmul per
        # row tile; activations read from HBM once, MXU N-dim = 2*H*C + H*Cv.
        w = jnp.concatenate([qw, kvw], axis=1)
        b = jnp.concatenate([qb, jnp.zeros((1, H * C + H * Cv), jnp.float32)], axis=1)
        out = _ln_project(q_data.reshape(B * Q, A), w, b, q_dtype,
                          mxu_dtype=mxu_dtype, row_tile=row_tile)
        q = out[:, : H * C].reshape(B, Q, H, C)
        k = out[:, H * C: 2 * H * C].reshape(B, Q, H, C)
        v = out[:, 2 * H * C:].reshape(B, Q, H, Cv)
        return q, k, v

    if Q == K:
        # Single fused pallas_call: each grid step handles one q-row tile and one
        # m-row tile; k|v emitted as one lane-dense concatenated slab.
        q2d, kv2d = _ln_project_two_stream(
            q_data.reshape(B * Q, A), m_data.reshape(B * K, M),
            qw, qb, kvw, q_dtype, kv_dtype,
            mxu_dtype=mxu_dtype, row_tile=row_tile)
    else:
        # Ragged Q != K: fall back to two calls (each still one fused LN+matmul/tile).
        q2d = _ln_project(q_data.reshape(B * Q, A), qw, qb, q_dtype,
                          mxu_dtype=mxu_dtype, row_tile=row_tile)
        kv2d = _ln_project(m_data.reshape(B * K, M), kvw,
                           jnp.zeros((1, H * C + H * Cv), jnp.float32), kv_dtype,
                           mxu_dtype=mxu_dtype, row_tile=row_tile)

    q = q2d.reshape(B, Q, H, C)
    k = kv2d[:, : H * C].reshape(B, K, H, C)
    v = kv2d[:, H * C:].reshape(B, K, H, Cv)
    return q, k, v


# ------------------------------- references -------------------------------

def _reference_qkv_f32(q_data, m_data, query_w, query_b, key_w, value_w, eps=_LN_EPS):
    def ln(x):
        x = x.astype(jnp.float32)
        mu = jnp.mean(x, axis=-1, keepdims=True)
        var = jnp.mean((x - mu) ** 2, axis=-1, keepdims=True)
        return (x - mu) / jnp.sqrt(var + eps)

    C = query_w.shape[-1]
    qn, mn = ln(q_data), ln(m_data)
    q = (jnp.einsum('bqa,ahc->bqhc', qn, query_w) + query_b) * C ** (-0.5)
    k = jnp.einsum('bka,ahc->bkhc', mn, key_w)
    v = jnp.einsum('bka,ahc->bkhc', mn, value_w)
    return q, k, v


def _reference_qkv_bf16_mxu(q_data, m_data, query_w, query_b, key_w, value_w, eps=_LN_EPS):
    # Mirrors the kernel numerics: f32 LayerNorm, bf16 MXU operands, f32 accumulation.
    def ln(x):
        x = x.astype(jnp.float32)
        mu = jnp.mean(x, axis=-1, keepdims=True)
        var = jnp.mean((x - mu) ** 2, axis=-1, keepdims=True)
        return (x - mu) * jax.lax.rsqrt(var + eps)

    C = query_w.shape[-1]
    scale = float(C) ** -0.5
    qn = ln(q_data).astype(jnp.bfloat16)
    mn = ln(m_data).astype(jnp.bfloat16)
    qw = (query_w * scale).astype(jnp.bfloat16)
    q = jnp.einsum('bqa,ahc->bqhc', qn, qw,
                   preferred_element_type=jnp.float32) + query_b * scale
    k = jnp.einsum('bka,ahc->bkhc', mn, key_w.astype(jnp.bfloat16),
                   preferred_element_type=jnp.float32)
    v = jnp.einsum('bka,ahc->bkhc', mn, value_w.astype(jnp.bfloat16),
                   preferred_element_type=jnp.float32)
    return q, k, v


if __name__ == "__main__":
    # Small shapes consistent with the module: a_dim = m_dim divisible by num_head,
    # chosen so H*key_dim = 128 (lane-dense slabs) and B*seq spans several row tiles.
    B, Q, K = 2, 256, 256
    num_head, a_dim, m_dim = 4, 128, 128
    key_dim = a_dim // num_head
    value_dim = m_dim // num_head

    key = jax.random.PRNGKey(0)
    ks = jax.random.split(key, 7)
    q_data = jax.random.normal(ks[0], (B, Q, a_dim), dtype=jnp.float32)
    m_data = jax.random.normal(ks[1], (B, K, m_dim), dtype=jnp.float32)
    # mask / nonbatched_bias are forward() arguments but unused (dead code path).
    mask = jnp.ones((Q, K), dtype=jnp.float32)
    nonbatched_bias = jnp.zeros((0, Q, K), dtype=jnp.float32)
    del mask, nonbatched_bias

    query_w = 0.1 * jax.random.normal(ks[2], (a_dim, num_head, key_dim), dtype=jnp.float32)
    query_b = 0.1 * jax.random.normal(ks[3], (1, num_head, key_dim), dtype=jnp.float32)
    key_w = 0.1 * jax.random.normal(ks[4], (m_dim, num_head, key_dim), dtype=jnp.float32)
    value_w = 0.1 * jax.random.normal(ks[5], (m_dim, num_head, value_dim), dtype=jnp.float32)
    # gating_w exists in __init__ but is unused on the executed forward path.
    gating_w = 0.1 * jax.random.normal(ks[6], (a_dim, num_head, value_dim), dtype=jnp.float32)
    del gating_w

    # --- general path (distinct q_data / m_data): one fused pallas_call ---
    q, k, v = self_attention1_qkv(q_data, m_data, query_w, query_b, key_w, value_w)
    jax.block_until_ready((q, k, v))
    assert q.shape == (B, Q, num_head, key_dim)
    assert k.shape == (B, K, num_head, key_dim)
    assert v.shape == (B, K, num_head, value_dim)

    qm, km, vm = _reference_qkv_bf16_mxu(q_data, m_data, query_w, query_b, key_w, value_w)
    assert jnp.allclose(q, qm, atol=2e-3, rtol=2e-3)
    assert jnp.allclose(k, km, atol=2e-3, rtol=2e-3)
    assert jnp.allclose(v, vm, atol=2e-3, rtol=2e-3)

    qr, kr, vr = _reference_qkv_f32(q_data, m_data, query_w, query_b, key_w, value_w)
    assert jnp.allclose(q, qr, atol=5e-2, rtol=5e-2)
    assert jnp.allclose(k, kr, atol=5e-2, rtol=5e-2)
    assert jnp.allclose(v, vr, atol=5e-2, rtol=5e-2)

    # --- shared-input fast path (q_data is m_data): single LN + one wide matmul ---
    q2, k2, v2 = self_attention1_qkv(q_data, q_data, query_w, query_b, key_w, value_w)
    jax.block_until_ready((q2, k2, v2))
    qm2, km2, vm2 = _reference_qkv_bf16_mxu(q_data, q_data, query_w, query_b, key_w, value_w)
    assert jnp.allclose(q2, qm2, atol=2e-3, rtol=2e-3)
    assert jnp.allclose(k2, km2, atol=2e-3, rtol=2e-3)
    assert jnp.allclose(v2, vm2, atol=2e-3, rtol=2e-3)

    # --- bf16 activations (halves activation HBM reads; LN stays f32 in-kernel) ---
    qb16, kb16, vb16 = self_attention1_qkv(
        q_data.astype(jnp.bfloat16), m_data.astype(jnp.bfloat16),
        query_w, query_b, key_w, value_w)
    jax.block_until_ready((qb16, kb16, vb16))
    assert qb16.dtype == jnp.bfloat16 and kb16.dtype == jnp.bfloat16
    assert jnp.allclose(qb16.astype(jnp.float32), qr, atol=1e-1, rtol=1e-1)
    assert jnp.allclose(kb16.astype(jnp.float32), kr, atol=1e-1, rtol=1e-1)
    assert jnp.allclose(vb16.astype(jnp.float32), vr, atol=1e-1, rtol=1e-1)

    print("KERNEL_OK")
</pallas_src>

<mosaic_0001>
module attributes {stable_mosaic.version = 11 : i64} {
  func.func @_ln_project_two_stream_kernel(%arg0: i32, %arg1: memref<128x128xf32, #tpu.memory_space<vmem>>, %arg2: memref<128x128xf32, #tpu.memory_space<vmem>>, %arg3: memref<128x128xbf16, #tpu.memory_space<vmem>>, %arg4: memref<1x128xf32, #tpu.memory_space<vmem>>, %arg5: memref<128x256xbf16, #tpu.memory_space<vmem>>, %arg6: memref<128x128xf32, #tpu.memory_space<vmem>>, %arg7: memref<128x256xf32, #tpu.memory_space<vmem>>) attributes {dimension_semantics = [#tpu.dimension_semantics<parallel>], iteration_bounds = array<i64: 4>, scalar_prefetch = 0 : i64, scratch_operands = 0 : i64, tpu.core_type = #tpu.core_type<tc>, window_params = [{transform_indices = @transform_0, window_bounds = array<i64: 128, 128>}, {transform_indices = @transform_1, window_bounds = array<i64: 128, 128>}, {pipeline_mode = #tpu.pipeline_mode<synchronous>, transform_indices = @transform_2, window_bounds = array<i64: 128, 128>}, {pipeline_mode = #tpu.pipeline_mode<synchronous>, transform_indices = @transform_3, window_bounds = array<i64: 1, 128>}, {pipeline_mode = #tpu.pipeline_mode<synchronous>, transform_indices = @transform_4, window_bounds = array<i64: 128, 256>}, {transform_indices = @transform_5, window_bounds = array<i64: 128, 128>}, {transform_indices = @transform_6, window_bounds = array<i64: 128, 256>}]} {
    %c0 = arith.constant 0 : index
    %c0_0 = arith.constant 0 : index
    %0 = vector.load %arg1[%c0, %c0_0] : memref<128x128xf32, #tpu.memory_space<vmem>>, vector<128x128xf32>
    %cst = arith.constant dense<0.000000e+00> : vector<128xf32>
    %1 = vector.multi_reduction <add>, %0, %cst [1] : vector<128x128xf32> to vector<128xf32>
    %2 = vector.shape_cast %1 : vector<128xf32> to vector<128x1xf32>
    %cst_1 = arith.constant 1.280000e+02 : f32
    %3 = vector.broadcast %cst_1 : f32 to vector<128x1xf32>
    %4 = arith.divf %2, %3 : vector<128x1xf32>
    %5 = vector.broadcast %4 : vector<128x1xf32> to vector<128x128xf32>
    %6 = arith.subf %0, %5 : vector<128x128xf32>
    %7 = arith.mulf %6, %6 : vector<128x128xf32>
    %cst_2 = arith.constant dense<0.000000e+00> : vector<128xf32>
    %8 = vector.multi_reduction <add>, %7, %cst_2 [1] : vector<128x128xf32> to vector<128xf32>
    %9 = vector.shape_cast %8 : vector<128xf32> to vector<128x1xf32>
    %cst_3 = arith.constant 1.280000e+02 : f32
    %10 = vector.broadcast %cst_3 : f32 to vector<128x1xf32>
    %11 = arith.divf %9, %10 : vector<128x1xf32>
    %cst_4 = arith.constant 9.99999974E-6 : f32
    %12 = vector.broadcast %cst_4 : f32 to vector<128x1xf32>
    %13 = arith.addf %11, %12 : vector<128x1xf32>
    %14 = math.rsqrt %13 : vector<128x1xf32>
    %15 = vector.broadcast %14 : vector<128x1xf32> to vector<128x128xf32>
    %16 = arith.mulf %6, %15 : vector<128x128xf32>
    %17 = arith.truncf %16 : vector<128x128xf32> to vector<128x128xbf16>
    %c0_5 = arith.constant 0 : index
    %c0_6 = arith.constant 0 : index
    %18 = vector.load %arg3[%c0_5, %c0_6] : memref<128x128xbf16, #tpu.memory_space<vmem>>, vector<128x128xbf16>
    %cst_7 = arith.constant dense<0.000000e+00> : vector<128x128xf32>
    %19 = tpu.matmul %17, %18, %cst_7 {dimension_numbers = #tpu.dot_dimension_numbers<[1], [0], [0], [1], [0, 0, 1, 1], [], []>} : vector<128x128xbf16>, vector<128x128xbf16>, vector<128x128xf32> -> vector<128x128xf32>
    %c0_8 = arith.constant 0 : index
    %c0_9 = arith.constant 0 : index
    %20 = vector.load %arg4[%c0_8, %c0_9] : memref<1x128xf32, #tpu.memory_space<vmem>>, vector<1x128xf32>
    %21 = vector.broadcast %20 : vector<1x128xf32> to vector<128x128xf32>
    %22 = arith.addf %19, %21 : vector<128x128xf32>
    %c0_10 = arith.constant 0 : index
    %c0_11 = arith.constant 0 : index
    %23 = vector.load %arg6[%c0_10, %c0_11] : memref<128x128xf32, #tpu.memory_space<vmem>>, vector<128x128xf32>
    tpu.vector_store %arg6[%c0_10, %c0_11], %22 {strides = array<i32>} : memref<128x128xf32, #tpu.memory_space<vmem>>, vector<128x128xf32>,
    %c0_12 = arith.constant 0 : index
    %c0_13 = arith.constant 0 : index
    %24 = vector.load %arg2[%c0_12, %c0_13] : memref<128x128xf32, #tpu.memory_space<vmem>>, vector<128x128xf32>
    %cst_14 = arith.constant dense<0.000000e+00> : vector<128xf32>
    %25 = vector.multi_reduction <add>, %24, %cst_14 [1] : vector<128x128xf32> to vector<128xf32>
    %26 = vector.shape_cast %25 : vector<128xf32> to vector<128x1xf32>
    %cst_15 = arith.constant 1.280000e+02 : f32
    %27 = vector.broadcast %cst_15 : f32 to vector<128x1xf32>
    %28 = arith.divf %26, %27 : vector<128x1xf32>
    %29 = vector.broadcast %28 : vector<128x1xf32> to vector<128x128xf32>
    %30 = arith.subf %24, %29 : vector<128x128xf32>
    %31 = arith.mulf %30, %30 : vector<128x128xf32>
    %cst_16 = arith.constant dense<0.000000e+00> : vector<128xf32>
    %32 = vector.multi_reduction <add>, %31, %cst_16 [1] : vector<128x128xf32> to vector<128xf32>
    %33 = vector.shape_cast %32 : vector<128xf32> to vector<128x1xf32>
    %cst_17 = arith.constant 1.280000e+02 : f32
    %34 = vector.broadcast %cst_17 : f32 to vector<128x1xf32>
    %35 = arith.divf %33, %34 : vector<128x1xf32>
    %cst_18 = arith.constant 9.99999974E-6 : f32
    %36 = vector.broadcast %cst_18 : f32 to vector<128x1xf32>
    %37 = arith.addf %35, %36 : vector<128x1xf32>
    %38 = math.rsqrt %37 : vector<128x1xf32>
    %39 = vector.broadcast %38 : vector<128x1xf32> to vector<128x128xf32>
    %40 = arith.mulf %30, %39 : vector<128x128xf32>
    %41 = arith.truncf %40 : vector<128x128xf32> to vector<128x128xbf16>
    %c0_19 = arith.constant 0 : index
    %c0_20 = arith.constant 0 : index
    %42 = vector.load %arg5[%c0_19, %c0_20] : memref<128x256xbf16, #tpu.memory_space<vmem>>, vector<128x256xbf16>
    %cst_21 = arith.constant dense<0.000000e+00> : vector<128x256xf32>
    %43 = tpu.matmul %41, %42, %cst_21 {dimension_numbers = #tpu.dot_dimension_numbers<[1], [0], [0], [1], [0, 0, 1, 1], [], []>} : vector<128x128xbf16>, vector<128x256xbf16>, vector<128x256xf32> -> vector<128x256xf32>
    %c0_22 = arith.constant 0 : index
    %c0_23 = arith.constant 0 : index
    %44 = vector.load %arg7[%c0_22, %c0_23] : memref<128x256xf32, #tpu.memory_space<vmem>>, vector<128x256xf32>
    tpu.vector_store %arg7[%c0_22, %c0_23], %43 {strides = array<i32>} : memref<128x256xf32, #tpu.memory_space<vmem>>, vector<128x256xf32>,
    return
  }
  func.func @transform_0(%arg0: i32) -> (i32, i32) {
    %c0_i32 = arith.constant 0 : i32
    %c0_i32_0 = arith.constant 0 : i32
    return %arg0, %c0_i32 : i32, i32
  }
  func.func @transform_1(%arg0: i32) -> (i32, i32) {
    %c0_i32 = arith.constant 0 : i32
    %c0_i32_0 = arith.constant 0 : i32
    return %arg0, %c0_i32 : i32, i32
  }
  func.func @transform_2(%arg0: i32) -> (i32, i32) {
    %c0_i32 = arith.constant 0 : i32
    %c0_i32_0 = arith.constant 0 : i32
    %c0_i32_1 = arith.constant 0 : i32
    return %c0_i32, %c0_i32_0 : i32, i32
  }
  func.func @transform_3(%arg0: i32) -> (i32, i32) {
    %c0_i32 = arith.constant 0 : i32
    %c0_i32_0 = arith.constant 0 : i32
    %c0_i32_1 = arith.constant 0 : i32
    return %c0_i32, %c0_i32_0 : i32, i32
  }
  func.func @transform_4(%arg0: i32) -> (i32, i32) {
    %c0_i32 = arith.constant 0 : i32
    %c0_i32_0 = arith.constant 0 : i32
    %c0_i32_1 = arith.constant 0 : i32
    return %c0_i32, %c0_i32_0 : i32, i32
  }
  func.func @transform_5(%arg0: i32) -> (i32, i32) {
    %c0_i32 = arith.constant 0 : i32
    %c0_i32_0 = arith.constant 0 : i32
    return %arg0, %c0_i32 : i32, i32
  }
  func.func @transform_6(%arg0: i32) -> (i32, i32) {
    %c0_i32 = arith.constant 0 : i32
    %c0_i32_0 = arith.constant 0 : i32
    return %arg0, %c0_i32 : i32, i32
  }
}

module attributes {stable_mosaic.version = 11 : i64} {
  func.func @_ln_project_two_stream_kernel(%arg0: i32, %arg1: memref<128x128xf32, #tpu.memory_space<vmem>>, %arg2: memref<128x128xf32, #tpu.memory_space<vmem>>, %arg3: memref<128x128xbf16, #tpu.memory_space<vmem>>, %arg4: memref<1x128xf32, #tpu.memory_space<vmem>>, %arg5: memref<128x256xbf16, #tpu.memory_space<vmem>>, %arg6: memref<128x128xf32, #tpu.memory_space<vmem>>, %arg7: memref<128x256xf32, #tpu.memory_space<vmem>>) attributes {dimension_semantics = [#tpu.dimension_semantics<parallel>], iteration_bounds = array<i64: 4>, scalar_prefetch = 0 : i64, scratch_operands = 0 : i64, tpu.core_type = #tpu.core_type<tc>, window_params = [{transform_indices = @transform_0, window_bounds = array<i64: 128, 128>}, {transform_indices = @transform_1, window_bounds = array<i64: 128, 128>}, {pipeline_mode = #tpu.pipeline_mode<synchronous>, transform_indices = @transform_2, window_bounds = array<i64: 128, 128>}, {pipeline_mode = #tpu.pipeline_mode<synchronous>, transform_indices = @transform_3, window_bounds = array<i64: 1, 128>}, {pipeline_mode = #tpu.pipeline_mode<synchronous>, transform_indices = @transform_4, window_bounds = array<i64: 128, 256>}, {transform_indices = @transform_5, window_bounds = array<i64: 128, 128>}, {transform_indices = @transform_6, window_bounds = array<i64: 128, 256>}]} {
    %c0 = arith.constant 0 : index
    %c0_0 = arith.constant 0 : index
    %0 = vector.load %arg1[%c0, %c0_0] : memref<128x128xf32, #tpu.memory_space<vmem>>, vector<128x128xf32>
    %cst = arith.constant dense<0.000000e+00> : vector<128xf32>
    %1 = vector.multi_reduction <add>, %0, %cst [1] : vector<128x128xf32> to vector<128xf32>
    %2 = vector.shape_cast %1 : vector<128xf32> to vector<128x1xf32>
    %cst_1 = arith.constant 1.280000e+02 : f32
    %3 = vector.broadcast %cst_1 : f32 to vector<128x1xf32>
    %4 = arith.divf %2, %3 : vector<128x1xf32>
    %5 = vector.broadcast %4 : vector<128x1xf32> to vector<128x128xf32>
    %6 = arith.subf %0, %5 : vector<128x128xf32>
    %7 = arith.mulf %6, %6 : vector<128x128xf32>
    %cst_2 = arith.constant dense<0.000000e+00> : vector<128xf32>
    %8 = vector.multi_reduction <add>, %7, %cst_2 [1] : vector<128x128xf32> to vector<128xf32>
    %9 = vector.shape_cast %8 : vector<128xf32> to vector<128x1xf32>
    %cst_3 = arith.constant 1.280000e+02 : f32
    %10 = vector.broadcast %cst_3 : f32 to vector<128x1xf32>
    %11 = arith.divf %9, %10 : vector<128x1xf32>
    %cst_4 = arith.constant 9.99999974E-6 : f32
    %12 = vector.broadcast %cst_4 : f32 to vector<128x1xf32>
    %13 = arith.addf %11, %12 : vector<128x1xf32>
    %14 = math.rsqrt %13 : vector<128x1xf32>
    %15 = vector.broadcast %14 : vector<128x1xf32> to vector<128x128xf32>
    %16 = arith.mulf %6, %15 : vector<128x128xf32>
    %17 = arith.truncf %16 : vector<128x128xf32> to vector<128x128xbf16>
    %c0_5 = arith.constant 0 : index
    %c0_6 = arith.constant 0 : index
    %18 = vector.load %arg3[%c0_5, %c0_6] : memref<128x128xbf16, #tpu.memory_space<vmem>>, vector<128x128xbf16>
    %cst_7 = arith.constant dense<0.000000e+00> : vector<128x128xf32>
    %19 = tpu.matmul %17, %18, %cst_7 {dimension_numbers = #tpu.dot_dimension_numbers<[1], [0], [0], [1], [0, 0, 1, 1], [], []>} : vector<128x128xbf16>, vector<128x128xbf16>, vector<128x128xf32> -> vector<128x128xf32>
    %c0_8 = arith.constant 0 : index
    %c0_9 = arith.constant 0 : index
    %20 = vector.load %arg4[%c0_8, %c0_9] : memref<1x128xf32, #tpu.memory_space<vmem>>, vector<1x128xf32>
    %21 = vector.broadcast %20 : vector<1x128xf32> to vector<128x128xf32>
    %22 = arith.addf %19, %21 : vector<128x128xf32>
    %c0_10 = arith.constant 0 : index
    %c0_11 = arith.constant 0 : index
    %23 = vector.load %arg6[%c0_10, %c0_11] : memref<128x128xf32, #tpu.memory_space<vmem>>, vector<128x128xf32>
    tpu.vector_store %arg6[%c0_10, %c0_11], %22 {strides = array<i32>} : memref<128x128xf32, #tpu.memory_space<vmem>>, vector<128x128xf32>,
    %c0_12 = arith.constant 0 : index
    %c0_13 = arith.constant 0 : index
    %24 = vector.load %arg2[%c0_12, %c0_13] : memref<128x128xf32, #tpu.memory_space<vmem>>, vector<128x128xf32>
    %cst_14 = arith.constant dense<0.000000e+00> : vector<128xf32>
    %25 = vector.multi_reduction <add>, %24, %cst_14 [1] : vector<128x128xf32> to vector<128xf32>
    %26 = vector.shape_cast %25 : vector<128xf32> to vector<128x1xf32>
    %cst_15 = arith.constant 1.280000e+02 : f32
    %27 = vector.broadcast %cst_15 : f32 to vector<128x1xf32>
    %28 = arith.divf %26, %27 : vector<128x1xf32>
    %29 = vector.broadcast %28 : vector<128x1xf32> to vector<128x128xf32>
    %30 = arith.subf %24, %29 : vector<128x128xf32>
    %31 = arith.mulf %30, %30 : vector<128x128xf32>
    %cst_16 = arith.constant dense<0.000000e+00> : vector<128xf32>
    %32 = vector.multi_reduction <add>, %31, %cst_16 [1] : vector<128x128xf32> to vector<128xf32>
    %33 = vector.shape_cast %32 : vector<128xf32> to vector<128x1xf32>
    %cst_17 = arith.constant 1.280000e+02 : f32
    %34 = vector.broadcast %cst_17 : f32 to vector<128x1xf32>
    %35 = arith.divf %33, %34 : vector<128x1xf32>
    %cst_18 = arith.constant 9.99999974E-6 : f32
    %36 = vector.broadcast %cst_18 : f32 to vector<128x1xf32>
    %37 = arith.addf %35, %36 : vector<128x1xf32>
    %38 = math.rsqrt %37 : vector<128x1xf32>
    %39 = vector.broadcast %38 : vector<128x1xf32> to vector<128x128xf32>
    %40 = arith.mulf %30, %39 : vector<128x128xf32>
    %41 = arith.truncf %40 : vector<128x128xf32> to vector<128x128xbf16>
    %c0_19 = arith.constant 0 : index
    %c0_20 = arith.constant 0 : index
    %42 = vector.load %arg5[%c0_19, %c0_20] : memref<128x256xbf16, #tpu.memory_space<vmem>>, vector<128x256xbf16>
    %cst_21 = arith.constant dense<0.000000e+00> : vector<128x256xf32>
    %43 = tpu.matmul %41, %42, %cst_21 {dimension_numbers = #tpu.dot_dimension_numbers<[1], [0], [0], [1], [0, 0, 1, 1], [], []>} : vector<128x128xbf16>, vector<128x256xbf16>, vector<128x256xf32> -> vector<128x256xf32>
    %c0_22 = arith.constant 0 : index
    %c0_23 = arith.constant 0 : index
    %44 = vector.load %arg7[%c0_22, %c0_23] : memref<128x256xf32, #tpu.memory_space<vmem>>, vector<128x256xf32>
    tpu.vector_store %arg7[%c0_22, %c0_23], %43 {strides = array<i32>} : memref<128x256xf32, #tpu.memory_space<vmem>>, vector<128x256xf32>,
    return
  }
  func.func @transform_0(%arg0: i32) -> (i32, i32) {
    %c0_i32 = arith.constant 0 : i32
    %c0_i32_0 = arith.constant 0 : i32
    return %arg0, %c0_i32 : i32, i32
  }
  func.func @transform_1(%arg0: i32) -> (i32, i32) {
    %c0_i32 = arith.constant 0 : i32
    %c0_i32_0 = arith.constant 0 : i32
    return %arg0, %c0_i32 : i32, i32
  }
  func.func @transform_2(%arg0: i32) -> (i32, i32) {
    %c0_i32 = arith.constant 0 : i32
    %c0_i32_0 = arith.constant 0 : i32
    %c0_i32_1 = arith.constant 0 : i32
    return %c0_i32, %c0_i32_0 : i32, i32
  }
  func.func @transform_3(%arg0: i32) -> (i32, i32) {
    %c0_i32 = arith.constant 0 : i32
    %c0_i32_0 = arith.constant 0 : i32
    %c0_i32_1 = arith.constant 0 : i32
    return %c0_i32, %c0_i32_0 : i32, i32
  }
  func.func @transform_4(%arg0: i32) -> (i32, i32) {
    %c0_i32 = arith.constant 0 : i32
    %c0_i32_0 = arith.constant 0 : i32
    %c0_i32_1 = arith.constant 0 : i32
    return %c0_i32, %c0_i32_0 : i32, i32
  }
  func.func @transform_5(%arg0: i32) -> (i32, i32) {
    %c0_i32 = arith.constant 0 : i32
    %c0_i32_0 = arith.constant 0 : i32
    return %arg0, %c0_i32 : i32, i32
  }
  func.func @transform_6(%arg0: i32) -> (i32, i32) {
    %c0_i32 = arith.constant 0 : i32
    %c0_i32_0 = arith.constant 0 : i32
    return %arg0, %c0_i32 : i32, i32
  }
}

</mosaic_0001>

<llo_original>
// kernel: tpu_custom_call.1
$region0: #{tpu_custom_call.1}
  #allocation0 [shape = 'u32[]', space=smem, size = 0x4, offset = 0x4, fixed_abs, tag = 'smem constant byte address 0x4 - core index']
  #allocation1 [shape = 'u32[144,128]{1,0:T(1,128)}', space=vmem, size = 0x12000, scoped, tag = 'internal scratch']
  %s0 = inlined_call_operand.hbm [shape: f32[512,128], index: 0, kind: input, shape index: {}]
  %s1 = inlined_call_operand.hbm [shape: f32[512,128], index: 1, kind: input, shape index: {}]
  %s2 = inlined_call_operand.hbm [shape: bf16[128,128], index: 2, kind: input, shape index: {}]
  %s3 = inlined_call_operand.vmem [shape: f32[1,128], index: 3, kind: input, shape index: {}]
  %s4 = inlined_call_operand.hbm [shape: bf16[128,256], index: 4, kind: input, shape index: {}]
  %s5 = inlined_call_operand.hbm [shape: f32[512,128], index: 5, kind: output, shape index: {0}]
  %s6 = inlined_call_operand.hbm [shape: f32[512,256], index: 6, kind: output, shape index: {1}]
  %7 = xla_tuple %s5, %s6
  %s8 = sld [smem:[#allocation0]]
  $region77: #{tpu_custom_call.1} parent=0
    _
  %s10 = ssub.s32 1, %s8
  %s11 = scalar_select 0, %s10, %s8
  $region1: #{tpu_custom_call.1} parent=0
    #allocation2 [shape = 'u8[131072]{0}', space=vmem, size = 0x20000, scoped, tag = 'input window, operand 0']
    #allocation3 [shape = 's32[2]{0}', space=sflag, size = 0x8, scoped, tag = 'scoped memory for tpu_custom_call.1']
    #allocation4 [shape = 's32[2]{0}', space=sflag, size = 0x8, scoped, tag = 'scoped memory for tpu_custom_call.1']
    #allocation5 [shape = 'u8[131072]{0}', space=vmem, size = 0x20000, scoped, tag = 'input window, operand 1']
    #allocation6 [shape = 's32[2]{0}', space=sflag, size = 0x8, scoped, tag = 'scoped memory for tpu_custom_call.1']
    #allocation7 [shape = 'u8[32768]{0}', space=vmem, size = 0x8000, scoped, tag = 'input window, operand 2, single buffered']
    #allocation8 [shape = 'u8[65536]{0}', space=vmem, size = 0x10000, scoped, tag = 'input window, operand 4, single buffered']
    #allocation9 [shape = 's32[1]{0}', space=sflag, size = 0x4, scoped, tag = 'scoped memory for tpu_custom_call.1']
    #allocation10 [shape = 'u8[131072]{0}', space=vmem, size = 0x20000, scoped, tag = 'output window, operand 0']
    #allocation11 [shape = 'u8[262144]{0}', space=vmem, size = 0x40000, scoped, tag = 'output window, operand 1']
    #allocation12 [shape = 's32[2]{0}', space=sflag, size = 0x8, scoped, tag = 'scoped memory for tpu_custom_call.1']
    %12 = vsyncpa [#allocation3], 0
    %s13 = scalar_lea.sflag [#allocation3], 1
    %14 = vsyncpa %s13, 0
    %15 = vsyncpa [#allocation6], 0
    %s16 = scalar_lea.sflag [#allocation6], 1
    %17 = vsyncpa %s16, 0
    %18 = vsyncpa [#allocation9], 0
    %19 = vsyncpa [#allocation4], 0
    %s20 = scalar_lea.sflag [#allocation4], 1
    %21 = vsyncpa %s20, 0
    %22 = vsyncpa [#allocation12], 0
    %s23 = scalar_lea.sflag [#allocation12], 1
    %24 = vsyncpa %s23, 0
    loop: start=0, step=1, limit=6
    $region2: #{tpu_custom_call.1} parent=1 // loop_pre_header
      _
    $region3: #{tpu_custom_call.1} parent=1 // loop_header
      %s26 = sphi 0, %s30
      %p27 = scmp.ge.s32.totalorder %s26, 6
      %s36 = sphi 0, %s38
      %s39 = sphi 0, %s36
      %s40 = sphi 0, %s39
      %s56 = sphi 0, %s40
      %s62 = sphi 0, %s64
      %s65 = sphi 0, %s62
      %s66 = sphi 0, %s65
      %s82 = sphi 0, %s66
      %s86 = sphi 0, %s86
      %s88 = sphi 0, %s86
      %s89 = sphi 0, %s88
      %s103 = sphi 0, %s89
      %s107 = sphi 0, %s107
      %s109 = sphi 0, %s107
      %s110 = sphi 0, %s109
      %s124 = sphi 0, %s110
      %s128 = sphi 0, %s128
      %s130 = sphi 0, %s128
      %s131 = sphi 0, %s130
      %s145 = sphi 0, %s131
      %s151 = sphi 0, %s153
      %s154 = sphi 0, %s151
      %s155 = sphi 0, %s154
      %s171 = sphi 0, %s155
      %s177 = sphi 0, %s179
      %s180 = sphi 0, %s177
      %s181 = sphi 0, %s180
      %s197 = sphi 0, %s181
    $region4: #{tpu_custom_call.1} parent=1 // loop_header_branch
      %29 = sbr.rel (%p27) target = $region8
    $region5: #{tpu_custom_call.1} parent=1 // loop_body
      %s31 = ssub.s32 %s26, 1
      %s32 = ssub.s32 %s26, 2
      %s33 = sadd.s32 %s26, 1
      %s34 = ssub.s32 %s26, %s33
      %p35 = scmp.eq.s32.totalorder %s34, 0
      %s37 = sadd.s32 %s36, 1
      %s38 = scalar_select %p35, %s36, %s37
      %p41 = pneg %p35
      %p42 = scmp.eq.s32.totalorder %s26, 3
      %p43 = por %p41, %p42
      %p44 = scmp.ne.s32.totalorder %s36, %s39
      %p45 = scmp.eq.s32.totalorder %s26, 0
      %p46 = por %p44, %p45
      %p47 = scmp.ne.s32.totalorder %s36, %s39
      %p48 = scmp.eq.s32.totalorder %s31, 3
      %p49 = por %p47, %p48
      %p50 = scmp.ne.s32.totalorder %s39, %s40
      %p51 = scmp.eq.s32.totalorder %s31, 0
      %p52 = por %p50, %p51
      %p53 = scmp.ne.s32.totalorder %s39, %s40
      %p54 = scmp.eq.s32.totalorder %s32, 3
      %p55 = por %p53, %p54
      %p57 = scmp.ne.s32.totalorder %s40, %s56
      %p58 = scmp.eq.s32.totalorder %s32, 0
      %p59 = por %p57, %p58
      %s60 = ssub.s32 %s26, %s33
      %p61 = scmp.eq.s32.totalorder %s60, 0
      %s63 = sadd.s32 %s62, 1
      %s64 = scalar_select %p61, %s62, %s63
      %p67 = pneg %p61
      %p68 = scmp.eq.s32.totalorder %s26, 3
      %p69 = por %p67, %p68
      %p70 = scmp.ne.s32.totalorder %s62, %s65
      %p71 = scmp.eq.s32.totalorder %s26, 0
      %p72 = por %p70, %p71
      %p73 = scmp.ne.s32.totalorder %s62, %s65
      %p74 = scmp.eq.s32.totalorder %s31, 3
      %p75 = por %p73, %p74
      %p76 = scmp.ne.s32.totalorder %s65, %s66
      %p77 = scmp.eq.s32.totalorder %s31, 0
      %p78 = por %p76, %p77
      %p79 = scmp.ne.s32.totalorder %s65, %s66
      %p80 = scmp.eq.s32.totalorder %s32, 3
      %p81 = por %p79, %p80
      %p83 = scmp.ne.s32.totalorder %s66, %s82
      %p84 = scmp.eq.s32.totalorder %s32, 0
      %p85 = por %p83, %p84
      %s87 = sadd.s32 %s86, 1
      %p90 = scmp.eq.s32.totalorder %s26, 3
      %p91 = scmp.ne.s32.totalorder %s86, %s88
      %p92 = scmp.eq.s32.totalorder %s26, 0
      %p93 = por %p91, %p92
      %p94 = scmp.ne.s32.totalorder %s86, %s88
      %p95 = scmp.eq.s32.totalorder %s31, 3
      %p96 = por %p94, %p95
      %p97 = scmp.ne.s32.totalorder %s88, %s89
      %p98 = scmp.eq.s32.totalorder %s31, 0
      %p99 = por %p97, %p98
      %p100 = scmp.ne.s32.totalorder %s88, %s89
      %p101 = scmp.eq.s32.totalorder %s32, 3
      %p102 = por %p100, %p101
      %p104 = scmp.ne.s32.totalorder %s89, %s103
      %p105 = scmp.eq.s32.totalorder %s32, 0
      %p106 = por %p104, %p105
      %s108 = sadd.s32 %s107, 1
      %p111 = scmp.eq.s32.totalorder %s26, 3
      %p112 = scmp.ne.s32.totalorder %s107, %s109
      %p113 = scmp.eq.s32.totalorder %s26, 0
      %p114 = por %p112, %p113
      %p115 = scmp.ne.s32.totalorder %s107, %s109
      %p116 = scmp.eq.s32.totalorder %s31, 3
      %p117 = por %p115, %p116
      %p118 = scmp.ne.s32.totalorder %s109, %s110
      %p119 = scmp.eq.s32.totalorder %s31, 0
      %p120 = por %p118, %p119
      %p121 = scmp.ne.s32.totalorder %s109, %s110
      %p122 = scmp.eq.s32.totalorder %s32, 3
      %p123 = por %p121, %p122
      %p125 = scmp.ne.s32.totalorder %s110, %s124
      %p126 = scmp.eq.s32.totalorder %s32, 0
      %p127 = por %p125, %p126
      %s129 = sadd.s32 %s128, 1
      %p132 = scmp.eq.s32.totalorder %s26, 3
      %p133 = scmp.ne.s32.totalorder %s128, %s130
      %p134 = scmp.eq.s32.totalorder %s26, 0
      %p135 = por %p133, %p134
      %p136 = scmp.ne.s32.totalorder %s128, %s130
      %p137 = scmp.eq.s32.totalorder %s31, 3
      %p138 = por %p136, %p137
      %p139 = scmp.ne.s32.totalorder %s130, %s131
      %p140 = scmp.eq.s32.totalorder %s31, 0
      %p141 = por %p139, %p140
      %p142 = scmp.ne.s32.totalorder %s130, %s131
      %p143 = scmp.eq.s32.totalorder %s32, 3
      %p144 = por %p142, %p143
      %p146 = scmp.ne.s32.totalorder %s131, %s145
      %p147 = scmp.eq.s32.totalorder %s32, 0
      %p148 = por %p146, %p147
      %s149 = ssub.s32 %s26, %s33
      %p150 = scmp.eq.s32.totalorder %s149, 0
      %s152 = sadd.s32 %s151, 1
      %s153 = scalar_select %p150, %s151, %s152
      %p156 = pneg %p150
      %p157 = scmp.eq.s32.totalorder %s26, 3
      %p158 = por %p156, %p157
      %p159 = scmp.ne.s32.totalorder %s151, %s154
      %p160 = scmp.eq.s32.totalorder %s26, 0
      %p161 = por %p159, %p160
      %p162 = scmp.ne.s32.totalorder %s151, %s154
      %p163 = scmp.eq.s32.totalorder %s31, 3
      %p164 = por %p162, %p163
      %p165 = scmp.ne.s32.totalorder %s154, %s155
      %p166 = scmp.eq.s32.totalorder %s31, 0
      %p167 = por %p165, %p166
      %p168 = scmp.ne.s32.totalorder %s154, %s155
      %p169 = scmp.eq.s32.totalorder %s32, 3
      %p170 = por %p168, %p169
      %p172 = scmp.ne.s32.totalorder %s155, %s171
      %p173 = scmp.eq.s32.totalorder %s32, 0
      %p174 = por %p172, %p173
      %s175 = ssub.s32 %s26, %s33
      %p176 = scmp.eq.s32.totalorder %s175, 0
      %s178 = sadd.s32 %s177, 1
      %s179 = scalar_select %p176, %s177, %s178
      %p182 = pneg %p176
      %p183 = scmp.eq.s32.totalorder %s26, 3
      %p184 = por %p182, %p183
      %p185 = scmp.ne.s32.totalorder %s177, %s180
      %p186 = scmp.eq.s32.totalorder %s26, 0
      %p187 = por %p185, %p186
      %p188 = scmp.ne.s32.totalorder %s177, %s180
      %p189 = scmp.eq.s32.totalorder %s31, 3
      %p190 = por %p188, %p189
      %p191 = scmp.ne.s32.totalorder %s180, %s181
      %p192 = scmp.eq.s32.totalorder %s31, 0
      %p193 = por %p191, %p192
      %p194 = scmp.ne.s32.totalorder %s180, %s181
      %p195 = scmp.eq.s32.totalorder %s32, 3
      %p196 = por %p194, %p195
      %p198 = scmp.ne.s32.totalorder %s181, %s197
      %p199 = scmp.eq.s32.totalorder %s32, 0
      %p200 = por %p198, %p199
      %p201 = scmp.le.s32.totalorder 1, %s26
      %p202 = scmp.lt.s32.totalorder %s26, 5
      %p203 = pnand %p201, %p202
      %p204 = pneg %p203
      // Predicated region
      $region9: #{tpu_custom_call.1} parent=5 // pred_check
        _
      $region10: #{tpu_custom_call.1} parent=5 // pred_check_branch
        %206 = sbr.rel (%p203) target = $region12
      $region11: #{tpu_custom_call.1} parent=5 // pred_region
        %s207 = ssub.s32 %s26, 1
        // Predicated region
        $region13: #{tpu_custom_call.1} parent=11 // pred_check
          %p208 = pneg %p99
        $region14: #{tpu_custom_call.1} parent=11 // pred_check_branch
          %210 = sbr.rel (%p208) target = $region16
        $region15: #{tpu_custom_call.1} parent=11 // pred_region
          %s212 = ssub.s32 1024, 1024
          %213 = vsyncadd [#allocation6], %s212
          %s214 = sshll.u32 [#allocation7], 4
          %s215 = int_to_ptr.vmem [resolvable:$true] %s214
          %220 = dma.hbm_to_vmem [thread:$0]  %s2, 1024, %s215, [#allocation6], 64, 64, 4
        $region16: #{tpu_custom_call.1} parent=11 // pred_fallthru
          _
        // Predicated region
        $region17: #{tpu_custom_call.1} parent=11 // pred_check
          %p221 = pneg %p120
        $region18: #{tpu_custom_call.1} parent=11 // pred_check_branch
          %223 = sbr.rel (%p221) target = $region20
        $region19: #{tpu_custom_call.1} parent=11 // pred_region
          _
        $region20: #{tpu_custom_call.1} parent=11 // pred_fallthru
          _
        // Predicated region
        $region21: #{tpu_custom_call.1} parent=11 // pred_check
          %p224 = pneg %p141
        $region22: #{tpu_custom_call.1} parent=11 // pred_check_branch
          %226 = sbr.rel (%p224) target = $region24
        $region23: #{tpu_custom_call.1} parent=11 // pred_region
          %s228 = ssub.s32 2048, 2048
          %229 = vsyncadd [#allocation9], %s228
          %s230 = sshll.u32 [#allocation8], 4
          %s231 = int_to_ptr.vmem [resolvable:$true] %s230
          %236 = dma.hbm_to_vmem [thread:$0]  %s4, 2048, %s231, [#allocation9], 128, 128, 8
        $region24: #{tpu_custom_call.1} parent=11 // pred_fallthru
          _
      $region12: #{tpu_custom_call.1} parent=5 // pred_fallthru
        _
      %p237 = scmp.lt.s32.totalorder %s26, 4
      // Predicated region
      $region25: #{tpu_custom_call.1} parent=5 // pred_check
        %p238 = pneg %p237
      $region26: #{tpu_custom_call.1} parent=5 // pred_check_branch
        %240 = sbr.rel (%p238) target = $region28
      $region27: #{tpu_custom_call.1} parent=5 // pred_region
        // Predicated region
        $region29: #{tpu_custom_call.1} parent=27 // pred_check
          %p241 = pneg %p46
        $region30: #{tpu_custom_call.1} parent=27 // pred_check_branch
          %243 = sbr.rel (%p241) target = $region32
        $region31: #{tpu_custom_call.1} parent=27 // pred_region
          %s244 = sand.u32 %s36, 1
          %s245 = scalar_lea.sflag [#allocation3], %s244
          %s246 = sand.u32 %s36, 1
          %s247 = smul.addr %s246, 128
          %s248 = scalar_lea.vmem [#allocation2], %s247
          %s249 = smul.u32 16, %s26
          %s251 = ssub.s32 2048, 2048
          %252 = vsyncadd %s245, %s251
          %s253 = smul.addr %s249, 128
          %s254 = scalar_lea.hbm %s0, %s253
          %s255 = sshll.u32 %s248, 4
          %s256 = int_to_ptr.vmem [resolvable:$true] %s255
          %261 = dma.hbm_to_vmem [thread:$0]  %s254, 2048, %s256, %s245, 128, 128, 8
        $region32: #{tpu_custom_call.1} parent=27 // pred_fallthru
          _
        // Predicated region
        $region33: #{tpu_custom_call.1} parent=27 // pred_check
          %p262 = pneg %p72
        $region34: #{tpu_custom_call.1} parent=27 // pred_check_branch
          %264 = sbr.rel (%p262) target = $region36
        $region35: #{tpu_custom_call.1} parent=27 // pred_region
          %s265 = sand.u32 %s26, 1
          %s266 = scalar_lea.sflag [#allocation6], %s265
          %s267 = sand.u32 %s62, 1
          %s268 = smul.addr %s267, 128
          %s269 = scalar_lea.vmem [#allocation5], %s268
          %s270 = smul.u32 16, %s26
          %s272 = ssub.s32 2048, 2048
          %273 = vsyncadd %s266, %s272
          %s274 = smul.addr %s270, 128
          %s275 = scalar_lea.hbm %s1, %s274
          %s276 = sshll.u32 %s269, 4
          %s277 = int_to_ptr.vmem [resolvable:$true] %s276
          %282 = dma.hbm_to_vmem [thread:$0]  %s275, 2048, %s277, %s266, 128, 128, 8
        $region36: #{tpu_custom_call.1} parent=27 // pred_fallthru
          _
      $region28: #{tpu_custom_call.1} parent=5 // pred_fallthru
        _
      %p283 = scmp.le.s32.totalorder 1, %s26
      %p284 = scmp.lt.s32.totalorder %s26, 5
      %p285 = pnand %p283, %p284
      %p286 = pneg %p285
      // Predicated region
      $region37: #{tpu_custom_call.1} parent=5 // pred_check
        _
      $region38: #{tpu_custom_call.1} parent=5 // pred_check_branch
        %288 = sbr.rel (%p285) target = $region40
      $region39: #{tpu_custom_call.1} parent=5 // pred_region
        %s289 = ssub.s32 %s26, 1
        %s290 = sand.u32 %s39, 1
        %s291 = scalar_lea.sflag [#allocation3], %s290
        %s292 = sand.u32 %s39, 1
        %s293 = smul.addr %s292, 128
        %s294 = scalar_lea.vmem [#allocation2], %s293
        // Predicated region
        $region41: #{tpu_custom_call.1} parent=39 // pred_check
          %p295 = pneg %p52
        $region42: #{tpu_custom_call.1} parent=39 // pred_check_branch
          %297 = sbr.rel (%p295) target = $region44
        $region43: #{tpu_custom_call.1} parent=39 // pred_region
          %298 = dma.done %s291, 2048
        $region44: #{tpu_custom_call.1} parent=39 // pred_fallthru
          _
        %s299 = sand.u32 %s31, 1
        %s300 = scalar_lea.sflag [#allocation6], %s299
        %s301 = sand.u32 %s65, 1
        %s302 = smul.addr %s301, 128
        %s303 = scalar_lea.vmem [#allocation5], %s302
        // Predicated region
        $region45: #{tpu_custom_call.1} parent=39 // pred_check
          %p304 = pneg %p78
        $region46: #{tpu_custom_call.1} parent=39 // pred_check_branch
          %306 = sbr.rel (%p304) target = $region48
        $region47: #{tpu_custom_call.1} parent=39 // pred_region
          %307 = dma.done %s300, 2048
        $region48: #{tpu_custom_call.1} parent=39 // pred_fallthru
          _
        // Predicated region
        $region49: #{tpu_custom_call.1} parent=39 // pred_check
          %p308 = pneg %p99
        $region50: #{tpu_custom_call.1} parent=39 // pred_check_branch
          %310 = sbr.rel (%p308) target = $region52
        $region51: #{tpu_custom_call.1} parent=39 // pred_region
          %311 = dma.done [#allocation6], 1024
        $region52: #{tpu_custom_call.1} parent=39 // pred_fallthru
          _
        // Predicated region
        $region53: #{tpu_custom_call.1} parent=39 // pred_check
          %p312 = pneg %p141
        $region54: #{tpu_custom_call.1} parent=39 // pred_check_branch
          %314 = sbr.rel (%p312) target = $region56
        $region55: #{tpu_custom_call.1} parent=39 // pred_region
          %315 = dma.done [#allocation9], 2048
        $region56: #{tpu_custom_call.1} parent=39 // pred_fallthru
          _
        %s316 = sand.u32 %s39, 1
        %s317 = scalar_lea.sflag [#allocation3], %s316
        %s318 = sand.u32 %s39, 1
        %s319 = smul.addr %s318, 128
        %s320 = scalar_lea.vmem [#allocation2], %s319
        %p321 = pneg %p52
        %p322 = pneg %p49
        %s323 = sand.u32 %s31, 1
        %s324 = scalar_lea.sflag [#allocation6], %s323
        %s325 = sand.u32 %s65, 1
        %s326 = smul.addr %s325, 128
        %s327 = scalar_lea.vmem [#allocation5], %s326
        %p328 = pneg %p78
        %p329 = pneg %p75
        %p330 = pneg %p99
        %p331 = pneg %p96
        %p332 = pneg %p120
        %p333 = pneg %p117
        %p334 = pneg %p141
        %p335 = pneg %p138
        %p336 = pneg %p167
        %p337 = pneg %p164
        %s338 = sand.u32 %s154, 1
        %s339 = scalar_lea.sflag [#allocation4], %s338
        %s340 = sand.u32 %s154, 1
        %s341 = smul.addr %s340, 128
        %s342 = scalar_lea.vmem [#allocation10], %s341
        %p343 = pneg %p193
        %p344 = pneg %p190
        %s345 = sand.u32 %s180, 1
        %s346 = scalar_lea.sflag [#allocation12], %s345
        %s347 = sand.u32 %s180, 1
        %s348 = smul.addr %s347, 256
        %s349 = scalar_lea.vmem [#allocation11], %s348
        %s350 = smul.u32 16, %s31
        %s351 = smul.u32 16, %s31
        %s352 = smul.u32 16, %s31
        %s353 = smul.u32 16, %s31
        %v355 = vld [vmem:[%s294] sm:$0xff]
        %v356 = vld [vmem:[%s294 + $0x8] sm:$0xff]
        %v357 = vld [vmem:[%s294 + $0x10] sm:$0xff]
        %v358 = vld [vmem:[%s294 + $0x18] sm:$0xff]
        %v359 = vld [vmem:[%s294 + $0x20] sm:$0xff]
        %v360 = vld [vmem:[%s294 + $0x28] sm:$0xff]
        %v361 = vld [vmem:[%s294 + $0x30] sm:$0xff]
        %v362 = vld [vmem:[%s294 + $0x38] sm:$0xff]
        %v363 = vld [vmem:[%s294 + $0x40] sm:$0xff]
        %v364 = vld [vmem:[%s294 + $0x48] sm:$0xff]
        %v365 = vld [vmem:[%s294 + $0x50] sm:$0xff]
        %v366 = vld [vmem:[%s294 + $0x58] sm:$0xff]
        %v367 = vld [vmem:[%s294 + $0x60] sm:$0xff]
        %v368 = vld [vmem:[%s294 + $0x68] sm:$0xff]
        %v369 = vld [vmem:[%s294 + $0x70] sm:$0xff]
        %v370 = vld [vmem:[%s294 + $0x78] sm:$0xff]
        %371 = vadd.xlane.f32.xlu0 %v355
        %v372 = vpop.xlane.xlu0 %371
        %373 = vadd.xlane.f32.xlu0 %v356
        %v374 = vpop.xlane.xlu0 %373
        %375 = vadd.xlane.f32.xlu0 %v357
        %v376 = vpop.xlane.xlu0 %375
        %377 = vadd.xlane.f32.xlu0 %v358
        %v378 = vpop.xlane.xlu0 %377
        %379 = vadd.xlane.f32.xlu0 %v359
        %v380 = vpop.xlane.xlu0 %379
        %381 = vadd.xlane.f32.xlu0 %v360
        %v382 = vpop.xlane.xlu0 %381
        %383 = vadd.xlane.f32.xlu0 %v361
        %v384 = vpop.xlane.xlu0 %383
        %385 = vadd.xlane.f32.xlu0 %v362
        %v386 = vpop.xlane.xlu0 %385
        %387 = vadd.xlane.f32.xlu0 %v363
        %v388 = vpop.xlane.xlu0 %387
        %389 = vadd.xlane.f32.xlu0 %v364
        %v390 = vpop.xlane.xlu0 %389
        %391 = vadd.xlane.f32.xlu0 %v365
        %v392 = vpop.xlane.xlu0 %391
        %393 = vadd.xlane.f32.xlu0 %v366
        %v394 = vpop.xlane.xlu0 %393
        %395 = vadd.xlane.f32.xlu0 %v367
        %v396 = vpop.xlane.xlu0 %395
        %397 = vadd.xlane.f32.xlu0 %v368
        %v398 = vpop.xlane.xlu0 %397
        %399 = vadd.xlane.f32.xlu0 %v369
        %v400 = vpop.xlane.xlu0 %399
        %401 = vadd.xlane.f32.xlu0 %v370
        %v402 = vpop.xlane.xlu0 %401
        %v403 = vrcp.pop 128.0
        %v404 = vmul.f32 %v372, %v403
        %v405 = vmul.f32 %v374, %v403
        %v406 = vmul.f32 %v376, %v403
        %v407 = vmul.f32 %v378, %v403
        %v408 = vmul.f32 %v380, %v403
        %v409 = vmul.f32 %v382, %v403
        %v410 = vmul.f32 %v384, %v403
        %v411 = vmul.f32 %v386, %v403
        %v412 = vmul.f32 %v388, %v403
        %v413 = vmul.f32 %v390, %v403
        %v414 = vmul.f32 %v392, %v403
        %v415 = vmul.f32 %v394, %v403
        %v416 = vmul.f32 %v396, %v403
        %v417 = vmul.f32 %v398, %v403
        %v418 = vmul.f32 %v400, %v403
        %v419 = vmul.f32 %v402, %v403
        %v420 = vsub.f32 %v355, %v404
        %v421 = vsub.f32 %v356, %v405
        %v422 = vsub.f32 %v357, %v406
        %v423 = vsub.f32 %v358, %v407
        %v424 = vsub.f32 %v359, %v408
        %v425 = vsub.f32 %v360, %v409
        %v426 = vsub.f32 %v361, %v410
        %v427 = vsub.f32 %v362, %v411
        %v428 = vsub.f32 %v363, %v412
        %v429 = vsub.f32 %v364, %v413
        %v430 = vsub.f32 %v365, %v414
        %v431 = vsub.f32 %v366, %v415
        %v432 = vsub.f32 %v367, %v416
        %v433 = vsub.f32 %v368, %v417
        %v434 = vsub.f32 %v369, %v418
        %v435 = vsub.f32 %v370, %v419
        %v436 = vmul.f32 %v420, %v420
        %v437 = vmul.f32 %v421, %v421
        %v438 = vmul.f32 %v422, %v422
        %v439 = vmul.f32 %v423, %v423
        %v440 = vmul.f32 %v424, %v424
        %v441 = vmul.f32 %v425, %v425
        %v442 = vmul.f32 %v426, %v426
        %v443 = vmul.f32 %v427, %v427
        %v444 = vmul.f32 %v428, %v428
        %v445 = vmul.f32 %v429, %v429
        %v446 = vmul.f32 %v430, %v430
        %v447 = vmul.f32 %v431, %v431
        %v448 = vmul.f32 %v432, %v432
        %v449 = vmul.f32 %v433, %v433
        %v450 = vmul.f32 %v434, %v434
        %v451 = vmul.f32 %v435, %v435
        %452 = vadd.xlane.f32.xlu0 %v436
        %v453 = vpop.xlane.xlu0 %452
        %454 = vadd.xlane.f32.xlu0 %v437
        %v455 = vpop.xlane.xlu0 %454
        %456 = vadd.xlane.f32.xlu0 %v438
        %v457 = vpop.xlane.xlu0 %456
        %458 = vadd.xlane.f32.xlu0 %v439
        %v459 = vpop.xlane.xlu0 %458
        %460 = vadd.xlane.f32.xlu0 %v440
        %v461 = vpop.xlane.xlu0 %460
        %462 = vadd.xlane.f32.xlu0 %v441
        %v463 = vpop.xlane.xlu0 %462
        %464 = vadd.xlane.f32.xlu0 %v442
        %v465 = vpop.xlane.xlu0 %464
        %466 = vadd.xlane.f32.xlu0 %v443
        %v467 = vpop.xlane.xlu0 %466
        %468 = vadd.xlane.f32.xlu0 %v444
        %v469 = vpop.xlane.xlu0 %468
        %470 = vadd.xlane.f32.xlu0 %v445
        %v471 = vpop.xlane.xlu0 %470
        %472 = vadd.xlane.f32.xlu0 %v446
        %v473 = vpop.xlane.xlu0 %472
        %474 = vadd.xlane.f32.xlu0 %v447
        %v475 = vpop.xlane.xlu0 %474
        %476 = vadd.xlane.f32.xlu0 %v448
        %v477 = vpop.xlane.xlu0 %476
        %478 = vadd.xlane.f32.xlu0 %v449
        %v479 = vpop.xlane.xlu0 %478
        %480 = vadd.xlane.f32.xlu0 %v450
        %v481 = vpop.xlane.xlu0 %480
        %482 = vadd.xlane.f32.xlu0 %v451
        %v483 = vpop.xlane.xlu0 %482
        %v484 = vmul.f32 %v453, %v403
        %v485 = vmul.f32 %v455, %v403
        %v486 = vmul.f32 %v457, %v403
        %v487 = vmul.f32 %v459, %v403
        %v488 = vmul.f32 %v461, %v403
        %v489 = vmul.f32 %v463, %v403
        %v490 = vmul.f32 %v465, %v403
        %v491 = vmul.f32 %v467, %v403
        %v492 = vmul.f32 %v469, %v403
        %v493 = vmul.f32 %v471, %v403
        %v494 = vmul.f32 %v473, %v403
        %v495 = vmul.f32 %v475, %v403
        %v496 = vmul.f32 %v477, %v403
        %v497 = vmul.f32 %v479, %v403
        %v498 = vmul.f32 %v481, %v403
        %v499 = vmul.f32 %v483, %v403
        %v500 = vadd.f32 %v484, 1e-05
        %v501 = vadd.f32 %v485, 1e-05
        %v502 = vadd.f32 %v486, 1e-05
        %v503 = vadd.f32 %v487, 1e-05
        %v504 = vadd.f32 %v488, 1e-05
        %v505 = vadd.f32 %v489, 1e-05
        %v506 = vadd.f32 %v490, 1e-05
        %v507 = vadd.f32 %v491, 1e-05
        %v508 = vadd.f32 %v492, 1e-05
        %v509 = vadd.f32 %v493, 1e-05
        %v510 = vadd.f32 %v494, 1e-05
        %v511 = vadd.f32 %v495, 1e-05
        %v512 = vadd.f32 %v496, 1e-05
        %v513 = vadd.f32 %v497, 1e-05
        %v514 = vadd.f32 %v498, 1e-05
        %v515 = vadd.f32 %v499, 1e-05
        %v516 = vrsqrt.pop %v500
        %v517 = vrsqrt.pop %v501
        %v518 = vrsqrt.pop %v502
        %v519 = vrsqrt.pop %v503
        %v520 = vrsqrt.pop %v504
        %v521 = vrsqrt.pop %v505
        %v522 = vrsqrt.pop %v506
        %v523 = vrsqrt.pop %v507
        %v524 = vrsqrt.pop %v508
        %v525 = vrsqrt.pop %v509
        %v526 = vrsqrt.pop %v510
        %v527 = vrsqrt.pop %v511
        %v528 = vrsqrt.pop %v512
        %v529 = vrsqrt.pop %v513
        %v530 = vrsqrt.pop %v514
        %v531 = vrsqrt.pop %v515
        %v532 = vmul.f32 %v420, %v516
        %v533 = vmul.f32 %v421, %v517
        %v534 = vmul.f32 %v422, %v518
        %v535 = vmul.f32 %v423, %v519
        %v536 = vmul.f32 %v424, %v520
        %v537 = vmul.f32 %v425, %v521
        %v538 = vmul.f32 %v426, %v522
        %v539 = vmul.f32 %v427, %v523
        %v540 = vmul.f32 %v428, %v524
        %v541 = vmul.f32 %v429, %v525
        %v542 = vmul.f32 %v430, %v526
        %v543 = vmul.f32 %v431, %v527
        %v544 = vmul.f32 %v432, %v528
        %v545 = vmul.f32 %v433, %v529
        %v546 = vmul.f32 %v434, %v530
        %v547 = vmul.f32 %v435, %v531
        %v548 = vpack.c.bf16 %v533, %v532
        %v549 = vpack.c.bf16 %v535, %v534
        %v550 = vpack.c.bf16 %v537, %v536
        %v551 = vpack.c.bf16 %v539, %v538
        %v552 = vpack.c.bf16 %v541, %v540
        %v553 = vpack.c.bf16 %v543, %v542
        %v554 = vpack.c.bf16 %v545, %v544
        %v555 = vpack.c.bf16 %v547, %v546
        %v556 = vld [vmem:[#allocation7] sm:$0xf]
        %v557 = vld [vmem:[#allocation7 + $0x4] sm:$0xf]
        %v558 = vld [vmem:[#allocation7 + $0x8] sm:$0xf]
        %v559 = vld [vmem:[#allocation7 + $0xc] sm:$0xf]
        %v560 = vld [vmem:[#allocation7 + $0x10] sm:$0xf]
        %v561 = vld [vmem:[#allocation7 + $0x14] sm:$0xf]
        %v562 = vld [vmem:[#allocation7 + $0x18] sm:$0xf]
        %v563 = vld [vmem:[#allocation7 + $0x1c] sm:$0xf]
        %v564 = vld [vmem:[#allocation7 + $0x20] sm:$0xf]
        %v565 = vld [vmem:[#allocation7 + $0x24] sm:$0xf]
        %v566 = vld [vmem:[#allocation7 + $0x28] sm:$0xf]
        %v567 = vld [vmem:[#allocation7 + $0x2c] sm:$0xf]
        %v568 = vld [vmem:[#allocation7 + $0x30] sm:$0xf]
        %v569 = vld [vmem:[#allocation7 + $0x34] sm:$0xf]
        %v570 = vld [vmem:[#allocation7 + $0x38] sm:$0xf]
        %v571 = vld [vmem:[#allocation7 + $0x3c] sm:$0xf]
        %v572 = vld [vmem:[%s3] sm:$0x1]
        %v574 = vlaneseq
        %v575 = vshrl.u32 %v574, 7
        %v576 = vsub.s32 0, %v575
        %v577 = vrot.slane %v572, %v576
        %v595 = vunpack.c.l.b16 %v556
        %v596 = vunpack.c.l.b16 %v557
        %v597 = vunpack.c.l.b16 %v558
        %v598 = vunpack.c.l.b16 %v559
        %v599 = vunpack.c.l.b16 %v560
        %v600 = vunpack.c.l.b16 %v561
        %v601 = vunpack.c.l.b16 %v562
        %v602 = vunpack.c.l.b16 %v563
        %v603 = vunpack.c.l.b16 %v564
        %v604 = vunpack.c.l.b16 %v565
        %v605 = vunpack.c.l.b16 %v566
        %v606 = vunpack.c.l.b16 %v567
        %v607 = vunpack.c.l.b16 %v568
        %v608 = vunpack.c.l.b16 %v569
        %v609 = vunpack.c.l.b16 %v570
        %v610 = vunpack.c.l.b16 %v571
        %v611 = vpack.c.b16 %v596, %v595
        %v612 = vpack.c.b16 %v598, %v597
        %v613 = vpack.c.b16 %v600, %v599
        %v614 = vpack.c.b16 %v602, %v601
        %v615 = vpack.c.b16 %v604, %v603
        %v616 = vpack.c.b16 %v606, %v605
        %v617 = vpack.c.b16 %v608, %v607
        %v618 = vpack.c.b16 %v610, %v609
        %627 = vmatprep.subr.bf16.mxu0 0
        %628 = vmatpush1.bf16.msra.mxu0 %v611
        %629 = vmatprep.subr.bf16.mxu0 0
        %630 = vmatpush1.bf16.msra.mxu0 %v612
        %631 = vmatprep.subr.bf16.mxu0 0
        %632 = vmatpush1.bf16.msra.mxu0 %v613
        %633 = vmatprep.subr.bf16.mxu0 0
        %634 = vmatpush1.bf16.msra.mxu0 %v614
        %635 = vmatprep.subr.bf16.mxu0 0
        %636 = vmatpush1.bf16.msra.mxu0 %v615
        %637 = vmatprep.subr.bf16.mxu0 0
        %638 = vmatpush1.bf16.msra.mxu0 %v616
        %639 = vmatprep.subr.bf16.mxu0 0
        %640 = vmatpush1.bf16.msra.mxu0 %v617
        %641 = vmatprep.subr.bf16.mxu0 0
        %642 = vmatpush1.bf16.msra.mxu0 %v618
        %643 = vmatprep.subr.bf16.mxu0 0
        %644 = vmatpush1.bf16.msra.mxu0 0
        %645 = vmatprep.subr.bf16.mxu0 0
        %646 = vmatpush1.bf16.msra.mxu0 0
        %647 = vmatprep.subr.bf16.mxu0 0
        %648 = vmatpush1.bf16.msra.mxu0 0
        %649 = vmatprep.subr.bf16.mxu0 0
        %650 = vmatpush1.bf16.msra.mxu0 0
        %651 = vmatprep.subr.bf16.mxu0 0
        %652 = vmatpush1.bf16.msra.mxu0 0
        %653 = vmatprep.subr.bf16.mxu0 0
        %654 = vmatpush1.bf16.msra.mxu0 0
        %655 = vmatprep.subr.bf16.mxu0 0
        %656 = vmatpush1.bf16.msra.mxu0 0
        %657 = vmatprep.subr.bf16.mxu0 0
        %658 = vmatpush1.bf16.msra.mxu0 0
        %659 = vmatprep.mubr.bf16.mxu0 0
        %660 = vmatmul.mubr.bf16.gmra.mrb[0].mxu0 %v548
        %v661 = vpop.f32.mrb[0].mxu0
        %v662 = vadd.f32 %v577, %v661
        %v663 = vpop.f32.mrb[0].mxu0
        %v664 = vpop.f32.mrb[0].mxu0
        %v665 = vadd.f32 %v577, %v664
        %v666 = vpop.f32.mrb[0].mxu0
        %667 = vmatprep.mubr.bf16.mxu0 0
        %668 = vmatmul.mubr.bf16.gmra.mrb[0].mxu0 %v549
        %v669 = vpop.f32.mrb[0].mxu0
        %v670 = vadd.f32 %v577, %v669
        %v671 = vpop.f32.mrb[0].mxu0
        %v672 = vpop.f32.mrb[0].mxu0
        %v673 = vadd.f32 %v577, %v672
        %v674 = vpop.f32.mrb[0].mxu0
        %675 = vmatprep.mubr.bf16.mxu0 0
        %676 = vmatmul.mubr.bf16.gmra.mrb[0].mxu0 %v550
        %v677 = vpop.f32.mrb[0].mxu0
        %v678 = vadd.f32 %v577, %v677
        %v679 = vpop.f32.mrb[0].mxu0
        %v680 = vpop.f32.mrb[0].mxu0
        %v681 = vadd.f32 %v577, %v680
        %v682 = vpop.f32.mrb[0].mxu0
        %683 = vmatprep.mubr.bf16.mxu0 0
        %684 = vmatmul.mubr.bf16.gmra.mrb[0].mxu0 %v551
        %v685 = vpop.f32.mrb[0].mxu0
        %v686 = vadd.f32 %v577, %v685
        %v687 = vpop.f32.mrb[0].mxu0
        %v688 = vpop.f32.mrb[0].mxu0
        %v689 = vadd.f32 %v577, %v688
        %v690 = vpop.f32.mrb[0].mxu0
        %691 = vmatprep.mubr.bf16.mxu0 0
        %692 = vmatmul.mubr.bf16.gmra.mrb[0].mxu0 %v552
        %v693 = vpop.f32.mrb[0].mxu0
        %v694 = vadd.f32 %v577, %v693
        %v695 = vpop.f32.mrb[0].mxu0
        %v696 = vpop.f32.mrb[0].mxu0
        %v697 = vadd.f32 %v577, %v696
        %v698 = vpop.f32.mrb[0].mxu0
        %699 = vmatprep.mubr.bf16.mxu0 0
        %700 = vmatmul.mubr.bf16.gmra.mrb[0].mxu0 %v553
        %v701 = vpop.f32.mrb[0].mxu0
        %v702 = vadd.f32 %v577, %v701
        %v703 = vpop.f32.mrb[0].mxu0
        %v704 = vpop.f32.mrb[0].mxu0
        %v705 = vadd.f32 %v577, %v704
        %v706 = vpop.f32.mrb[0].mxu0
        %707 = vmatprep.mubr.bf16.mxu0 0
        %708 = vmatmul.mubr.bf16.gmra.mrb[0].mxu0 %v554
        %v709 = vpop.f32.mrb[0].mxu0
        %v710 = vadd.f32 %v577, %v709
        %v711 = vpop.f32.mrb[0].mxu0
        %v712 = vpop.f32.mrb[0].mxu0
        %v713 = vadd.f32 %v577, %v712
        %v714 = vpop.f32.mrb[0].mxu0
        %715 = vmatprep.mubr.bf16.mxu0 0
        %716 = vmatmul.mubr.bf16.gmra.mrb[0].mxu0 %v555
        %v717 = vpop.f32.mrb[0].mxu0
        %v718 = vadd.f32 %v577, %v717
        %v719 = vpop.f32.mrb[0].mxu0
        %v720 = vpop.f32.mrb[0].mxu0
        %v721 = vadd.f32 %v577, %v720
        %v722 = vpop.f32.mrb[0].mxu0
        %723 = vdwg.mxu0
        %724 = vst [vmem:[%s342] sm:$0xff] %v662
        %725 = vst [vmem:[%s342 + $0x8] sm:$0xff] %v665
        %726 = vst [vmem:[%s342 + $0x10] sm:$0xff] %v670
        %727 = vst [vmem:[%s342 + $0x18] sm:$0xff] %v673
        %728 = vst [vmem:[%s342 + $0x20] sm:$0xff] %v678
        %729 = vst [vmem:[%s342 + $0x28] sm:$0xff] %v681
        %730 = vst [vmem:[%s342 + $0x30] sm:$0xff] %v686
        %731 = vst [vmem:[%s342 + $0x38] sm:$0xff] %v689
        %732 = vst [vmem:[%s342 + $0x40] sm:$0xff] %v694
        %733 = vst [vmem:[%s342 + $0x48] sm:$0xff] %v697
        %734 = vst [vmem:[%s342 + $0x50] sm:$0xff] %v702
        %735 = vst [vmem:[%s342 + $0x58] sm:$0xff] %v705
        %736 = vst [vmem:[%s342 + $0x60] sm:$0xff] %v710
        %737 = vst [vmem:[%s342 + $0x68] sm:$0xff] %v713
        %738 = vst [vmem:[%s342 + $0x70] sm:$0xff] %v718
        %739 = vst [vmem:[%s342 + $0x78] sm:$0xff] %v721
        %v740 = vld [vmem:[%s303] sm:$0xff]
        %v741 = vld [vmem:[%s303 + $0x8] sm:$0xff]
        %v742 = vld [vmem:[%s303 + $0x10] sm:$0xff]
        %v743 = vld [vmem:[%s303 + $0x18] sm:$0xff]
        %v744 = vld [vmem:[%s303 + $0x20] sm:$0xff]
        %v745 = vld [vmem:[%s303 + $0x28] sm:$0xff]
        %v746 = vld [vmem:[%s303 + $0x30] sm:$0xff]
        %v747 = vld [vmem:[%s303 + $0x38] sm:$0xff]
        %v748 = vld [vmem:[%s303 + $0x40] sm:$0xff]
        %v749 = vld [vmem:[%s303 + $0x48] sm:$0xff]
        %v750 = vld [vmem:[%s303 + $0x50] sm:$0xff]
        %v751 = vld [vmem:[%s303 + $0x58] sm:$0xff]
        %v752 = vld [vmem:[%s303 + $0x60] sm:$0xff]
        %v753 = vld [vmem:[%s303 + $0x68] sm:$0xff]
        %v754 = vld [vmem:[%s303 + $0x70] sm:$0xff]
        %v755 = vld [vmem:[%s303 + $0x78] sm:$0xff]
        %756 = vadd.xlane.f32.xlu0 %v740
        %v757 = vpop.xlane.xlu0 %756
        %758 = vadd.xlane.f32.xlu0 %v741
        %v759 = vpop.xlane.xlu0 %758
        %760 = vadd.xlane.f32.xlu0 %v742
        %v761 = vpop.xlane.xlu0 %760
        %762 = vadd.xlane.f32.xlu0 %v743
        %v763 = vpop.xlane.xlu0 %762
        %764 = vadd.xlane.f32.xlu0 %v744
        %v765 = vpop.xlane.xlu0 %764
        %766 = vadd.xlane.f32.xlu0 %v745
        %v767 = vpop.xlane.xlu0 %766
        %768 = vadd.xlane.f32.xlu0 %v746
        %v769 = vpop.xlane.xlu0 %768
        %770 = vadd.xlane.f32.xlu0 %v747
        %v771 = vpop.xlane.xlu0 %770
        %772 = vadd.xlane.f32.xlu0 %v748
        %v773 = vpop.xlane.xlu0 %772
        %774 = vadd.xlane.f32.xlu0 %v749
        %v775 = vpop.xlane.xlu0 %774
        %776 = vadd.xlane.f32.xlu0 %v750
        %v777 = vpop.xlane.xlu0 %776
        %778 = vadd.xlane.f32.xlu0 %v751
        %v779 = vpop.xlane.xlu0 %778
        %780 = vadd.xlane.f32.xlu0 %v752
        %v781 = vpop.xlane.xlu0 %780
        %782 = vadd.xlane.f32.xlu0 %v753
        %v783 = vpop.xlane.xlu0 %782
        %784 = vadd.xlane.f32.xlu0 %v754
        %v785 = vpop.xlane.xlu0 %784
        %786 = vadd.xlane.f32.xlu0 %v755
        %v787 = vpop.xlane.xlu0 %786
        %v788 = vmul.f32 %v757, %v403
        %v789 = vmul.f32 %v759, %v403
        %v790 = vmul.f32 %v761, %v403
        %v791 = vmul.f32 %v763, %v403
        %v792 = vmul.f32 %v765, %v403
        %v793 = vmul.f32 %v767, %v403
        %v794 = vmul.f32 %v769, %v403
        %v795 = vmul.f32 %v771, %v403
        %v796 = vmul.f32 %v773, %v403
        %v797 = vmul.f32 %v775, %v403
        %v798 = vmul.f32 %v777, %v403
        %v799 = vmul.f32 %v779, %v403
        %v800 = vmul.f32 %v781, %v403
        %v801 = vmul.f32 %v783, %v403
        %v802 = vmul.f32 %v785, %v403
        %v803 = vmul.f32 %v787, %v403
        %v804 = vsub.f32 %v740, %v788
        %v805 = vsub.f32 %v741, %v789
        %v806 = vsub.f32 %v742, %v790
        %v807 = vsub.f32 %v743, %v791
        %v808 = vsub.f32 %v744, %v792
        %v809 = vsub.f32 %v745, %v793
        %v810 = vsub.f32 %v746, %v794
        %v811 = vsub.f32 %v747, %v795
        %v812 = vsub.f32 %v748, %v796
        %v813 = vsub.f32 %v749, %v797
        %v814 = vsub.f32 %v750, %v798
        %v815 = vsub.f32 %v751, %v799
        %v816 = vsub.f32 %v752, %v800
        %v817 = vsub.f32 %v753, %v801
        %v818 = vsub.f32 %v754, %v802
        %v819 = vsub.f32 %v755, %v803
        %v820 = vmul.f32 %v804, %v804
        %v821 = vmul.f32 %v805, %v805
        %v822 = vmul.f32 %v806, %v806
        %v823 = vmul.f32 %v807, %v807
        %v824 = vmul.f32 %v808, %v808
        %v825 = vmul.f32 %v809, %v809
        %v826 = vmul.f32 %v810, %v810
        %v827 = vmul.f32 %v811, %v811
        %v828 = vmul.f32 %v812, %v812
        %v829 = vmul.f32 %v813, %v813
        %v830 = vmul.f32 %v814, %v814
        %v831 = vmul.f32 %v815, %v815
        %v832 = vmul.f32 %v816, %v816
        %v833 = vmul.f32 %v817, %v817
        %v834 = vmul.f32 %v818, %v818
        %v835 = vmul.f32 %v819, %v819
        %836 = vadd.xlane.f32.xlu0 %v820
        %v837 = vpop.xlane.xlu0 %836
        %838 = vadd.xlane.f32.xlu0 %v821
        %v839 = vpop.xlane.xlu0 %838
        %840 = vadd.xlane.f32.xlu0 %v822
        %v841 = vpop.xlane.xlu0 %840
        %842 = vadd.xlane.f32.xlu0 %v823
        %v843 = vpop.xlane.xlu0 %842
        %844 = vadd.xlane.f32.xlu0 %v824
        %v845 = vpop.xlane.xlu0 %844
        %846 = vadd.xlane.f32.xlu0 %v825
        %v847 = vpop.xlane.xlu0 %846
        %848 = vadd.xlane.f32.xlu0 %v826
        %v849 = vpop.xlane.xlu0 %848
        %850 = vadd.xlane.f32.xlu0 %v827
        %v851 = vpop.xlane.xlu0 %850
        %852 = vadd.xlane.f32.xlu0 %v828
        %v853 = vpop.xlane.xlu0 %852
        %854 = vadd.xlane.f32.xlu0 %v829
        %v855 = vpop.xlane.xlu0 %854
        %856 = vadd.xlane.f32.xlu0 %v830
        %v857 = vpop.xlane.xlu0 %856
        %858 = vadd.xlane.f32.xlu0 %v831
        %v859 = vpop.xlane.xlu0 %858
        %860 = vadd.xlane.f32.xlu0 %v832
        %v861 = vpop.xlane.xlu0 %860
        %862 = vadd.xlane.f32.xlu0 %v833
        %v863 = vpop.xlane.xlu0 %862
        %864 = vadd.xlane.f32.xlu0 %v834
        %v865 = vpop.xlane.xlu0 %864
        %866 = vadd.xlane.f32.xlu0 %v835
        %v867 = vpop.xlane.xlu0 %866
        %v868 = vmul.f32 %v837, %v403
        %v869 = vmul.f32 %v839, %v403
        %v870 = vmul.f32 %v841, %v403
        %v871 = vmul.f32 %v843, %v403
        %v872 = vmul.f32 %v845, %v403
        %v873 = vmul.f32 %v847, %v403
        %v874 = vmul.f32 %v849, %v403
        %v875 = vmul.f32 %v851, %v403
        %v876 = vmul.f32 %v853, %v403
        %v877 = vmul.f32 %v855, %v403
        %v878 = vmul.f32 %v857, %v403
        %v879 = vmul.f32 %v859, %v403
        %v880 = vmul.f32 %v861, %v403
        %v881 = vmul.f32 %v863, %v403
        %v882 = vmul.f32 %v865, %v403
        %v883 = vmul.f32 %v867, %v403
        %v884 = vadd.f32 %v868, 1e-05
        %v885 = vadd.f32 %v869, 1e-05
        %v886 = vadd.f32 %v870, 1e-05
        %v887 = vadd.f32 %v871, 1e-05
        %v888 = vadd.f32 %v872, 1e-05
        %v889 = vadd.f32 %v873, 1e-05
        %v890 = vadd.f32 %v874, 1e-05
        %v891 = vadd.f32 %v875, 1e-05
        %v892 = vadd.f32 %v876, 1e-05
        %v893 = vadd.f32 %v877, 1e-05
        %v894 = vadd.f32 %v878, 1e-05
        %v895 = vadd.f32 %v879, 1e-05
        %v896 = vadd.f32 %v880, 1e-05
        %v897 = vadd.f32 %v881, 1e-05
        %v898 = vadd.f32 %v882, 1e-05
        %v899 = vadd.f32 %v883, 1e-05
        %v900 = vrsqrt.pop %v884
        %v901 = vrsqrt.pop %v885
        %v902 = vrsqrt.pop %v886
        %v903 = vrsqrt.pop %v887
        %v904 = vrsqrt.pop %v888
        %v905 = vrsqrt.pop %v889
        %v906 = vrsqrt.pop %v890
        %v907 = vrsqrt.pop %v891
        %v908 = vrsqrt.pop %v892
        %v909 = vrsqrt.pop %v893
        %v910 = vrsqrt.pop %v894
        %v911 = vrsqrt.pop %v895
        %v912 = vrsqrt.pop %v896
        %v913 = vrsqrt.pop %v897
        %v914 = vrsqrt.pop %v898
        %v915 = vrsqrt.pop %v899
        %v916 = vmul.f32 %v804, %v900
        %v917 = vmul.f32 %v805, %v901
        %v918 = vmul.f32 %v806, %v902
        %v919 = vmul.f32 %v807, %v903
        %v920 = vmul.f32 %v808, %v904
        %v921 = vmul.f32 %v809, %v905
        %v922 = vmul.f32 %v810, %v906
        %v923 = vmul.f32 %v811, %v907
        %v924 = vmul.f32 %v812, %v908
        %v925 = vmul.f32 %v813, %v909
        %v926 = vmul.f32 %v814, %v910
        %v927 = vmul.f32 %v815, %v911
        %v928 = vmul.f32 %v816, %v912
        %v929 = vmul.f32 %v817, %v913
        %v930 = vmul.f32 %v818, %v914
        %v931 = vmul.f32 %v819, %v915
        %v932 = vpack.c.bf16 %v917, %v916
        %v933 = vpack.c.bf16 %v919, %v918
        %v934 = vpack.c.bf16 %v921, %v920
        %v935 = vpack.c.bf16 %v923, %v922
        %v936 = vpack.c.bf16 %v925, %v924
        %v937 = vpack.c.bf16 %v927, %v926
        %v938 = vpack.c.bf16 %v929, %v928
        %v939 = vpack.c.bf16 %v931, %v930
        %v940 = vld [vmem:[#allocation8] sm:$0xff]
        %v941 = vld [vmem:[#allocation8 + $0x8] sm:$0xff]
        %v942 = vld [vmem:[#allocation8 + $0x10] sm:$0xff]
        %v943 = vld [vmem:[#allocation8 + $0x18] sm:$0xff]
        %v944 = vld [vmem:[#allocation8 + $0x20] sm:$0xff]
        %v945 = vld [vmem:[#allocation8 + $0x28] sm:$0xff]
        %v946 = vld [vmem:[#allocation8 + $0x30] sm:$0xff]
        %v947 = vld [vmem:[#allocation8 + $0x38] sm:$0xff]
        %v948 = vld [vmem:[#allocation8 + $0x40] sm:$0xff]
        %v949 = vld [vmem:[#allocation8 + $0x48] sm:$0xff]
        %v950 = vld [vmem:[#allocation8 + $0x50] sm:$0xff]
        %v951 = vld [vmem:[#allocation8 + $0x58] sm:$0xff]
        %v952 = vld [vmem:[#allocation8 + $0x60] sm:$0xff]
        %v953 = vld [vmem:[#allocation8 + $0x68] sm:$0xff]
        %v954 = vld [vmem:[#allocation8 + $0x70] sm:$0xff]
        %v955 = vld [vmem:[#allocation8 + $0x78] sm:$0xff]
        %v972 = vunpack.c.l.b16 %v940
        %v973 = vunpack.c.h.b16 %v940
        %v974 = vunpack.c.l.b16 %v941
        %v975 = vunpack.c.h.b16 %v941
        %v976 = vunpack.c.l.b16 %v942
        %v977 = vunpack.c.h.b16 %v942
        %v978 = vunpack.c.l.b16 %v943
        %v979 = vunpack.c.h.b16 %v943
        %v980 = vunpack.c.l.b16 %v944
        %v981 = vunpack.c.h.b16 %v944
        %v982 = vunpack.c.l.b16 %v945
        %v983 = vunpack.c.h.b16 %v945
        %v984 = vunpack.c.l.b16 %v946
        %v985 = vunpack.c.h.b16 %v946
        %v986 = vunpack.c.l.b16 %v947
        %v987 = vunpack.c.h.b16 %v947
        %v988 = vunpack.c.l.b16 %v948
        %v989 = vunpack.c.h.b16 %v948
        %v990 = vunpack.c.l.b16 %v949
        %v991 = vunpack.c.h.b16 %v949
        %v992 = vunpack.c.l.b16 %v950
        %v993 = vunpack.c.h.b16 %v950
        %v994 = vunpack.c.l.b16 %v951
        %v995 = vunpack.c.h.b16 %v951
        %v996 = vunpack.c.l.b16 %v952
        %v997 = vunpack.c.h.b16 %v952
        %v998 = vunpack.c.l.b16 %v953
        %v999 = vunpack.c.h.b16 %v953
        %v1000 = vunpack.c.l.b16 %v954
        %v1001 = vunpack.c.h.b16 %v954
        %v1002 = vunpack.c.l.b16 %v955
        %v1003 = vunpack.c.h.b16 %v955
        %v1004 = vpack.c.b16 %v974, %v972
        %v1005 = vpack.c.b16 %v975, %v973
        %v1006 = vpack.c.b16 %v978, %v976
        %v1007 = vpack.c.b16 %v979, %v977
        %v1008 = vpack.c.b16 %v982, %v980
        %v1009 = vpack.c.b16 %v983, %v981
        %v1010 = vpack.c.b16 %v986, %v984
        %v1011 = vpack.c.b16 %v987, %v985
        %v1012 = vpack.c.b16 %v990, %v988
        %v1013 = vpack.c.b16 %v991, %v989
        %v1014 = vpack.c.b16 %v994, %v992
        %v1015 = vpack.c.b16 %v995, %v993
        %v1016 = vpack.c.b16 %v998, %v996
        %v1017 = vpack.c.b16 %v999, %v997
        %v1018 = vpack.c.b16 %v1002, %v1000
        %v1019 = vpack.c.b16 %v1003, %v1001
        %1036 = vmatprep.subr.bf16.mxu0 %v1005
        %1037 = vmatpush1.bf16.msra.mxu0 %v1004
        %1038 = vmatprep.subr.bf16.mxu0 %v1007
        %1039 = vmatpush1.bf16.msra.mxu0 %v1006
        %1040 = vmatprep.subr.bf16.mxu0 %v1009
        %1041 = vmatpush1.bf16.msra.mxu0 %v1008
        %1042 = vmatprep.subr.bf16.mxu0 %v1011
        %1043 = vmatpush1.bf16.msra.mxu0 %v1010
        %1044 = vmatprep.subr.bf16.mxu0 %v1013
        %1045 = vmatpush1.bf16.msra.mxu0 %v1012
        %1046 = vmatprep.subr.bf16.mxu0 %v1015
        %1047 = vmatpush1.bf16.msra.mxu0 %v1014
        %1048 = vmatprep.subr.bf16.mxu0 %v1017
        %1049 = vmatpush1.bf16.msra.mxu0 %v1016
        %1050 = vmatprep.subr.bf16.mxu0 %v1019
        %1051 = vmatpush1.bf16.msra.mxu0 %v1018
        %1052 = vmatprep.subr.bf16.mxu0 0
        %1053 = vmatpush1.bf16.msra.mxu0 0
        %1054 = vmatprep.subr.bf16.mxu0 0
        %1055 = vmatpush1.bf16.msra.mxu0 0
        %1056 = vmatprep.subr.bf16.mxu0 0
        %1057 = vmatpush1.bf16.msra.mxu0 0
        %1058 = vmatprep.subr.bf16.mxu0 0
        %1059 = vmatpush1.bf16.msra.mxu0 0
        %1060 = vmatprep.subr.bf16.mxu0 0
        %1061 = vmatpush1.bf16.msra.mxu0 0
        %1062 = vmatprep.subr.bf16.mxu0 0
        %1063 = vmatpush1.bf16.msra.mxu0 0
        %1064 = vmatprep.subr.bf16.mxu0 0
        %1065 = vmatpush1.bf16.msra.mxu0 0
        %1066 = vmatprep.subr.bf16.mxu0 0
        %1067 = vmatpush1.bf16.msra.mxu0 0
        %1068 = vmatprep.mubr.bf16.mxu0 0
        %1069 = vmatmul.mubr.bf16.gmra.mrb[0].mxu0 %v932
        %v1070 = vpop.f32.mrb[0].mxu0
        %v1071 = vadd.f32 0.0, %v1070
        %v1072 = vpop.f32.mrb[0].mxu0
        %v1073 = vadd.f32 0.0, %v1072
        %v1074 = vpop.f32.mrb[0].mxu0
        %v1075 = vadd.f32 0.0, %v1074
        %v1076 = vpop.f32.mrb[0].mxu0
        %v1077 = vadd.f32 0.0, %v1076
        %1078 = vmatprep.mubr.bf16.mxu0 0
        %1079 = vmatmul.mubr.bf16.gmra.mrb[0].mxu0 %v933
        %v1080 = vpop.f32.mrb[0].mxu0
        %v1081 = vadd.f32 0.0, %v1080
        %v1082 = vpop.f32.mrb[0].mxu0
        %v1083 = vadd.f32 0.0, %v1082
        %v1084 = vpop.f32.mrb[0].mxu0
        %v1085 = vadd.f32 0.0, %v1084
        %v1086 = vpop.f32.mrb[0].mxu0
        %v1087 = vadd.f32 0.0, %v1086
        %1088 = vmatprep.mubr.bf16.mxu0 0
        %1089 = vmatmul.mubr.bf16.gmra.mrb[0].mxu0 %v934
        %v1090 = vpop.f32.mrb[0].mxu0
        %v1091 = vadd.f32 0.0, %v1090
        %v1092 = vpop.f32.mrb[0].mxu0
        %v1093 = vadd.f32 0.0, %v1092
        %v1094 = vpop.f32.mrb[0].mxu0
        %v1095 = vadd.f32 0.0, %v1094
        %v1096 = vpop.f32.mrb[0].mxu0
        %v1097 = vadd.f32 0.0, %v1096
        %1098 = vmatprep.mubr.bf16.mxu0 0
        %1099 = vmatmul.mubr.bf16.gmra.mrb[0].mxu0 %v935
        %v1100 = vpop.f32.mrb[0].mxu0
        %v1101 = vadd.f32 0.0, %v1100
        %v1102 = vpop.f32.mrb[0].mxu0
        %v1103 = vadd.f32 0.0, %v1102
        %v1104 = vpop.f32.mrb[0].mxu0
        %v1105 = vadd.f32 0.0, %v1104
        %v1106 = vpop.f32.mrb[0].mxu0
        %v1107 = vadd.f32 0.0, %v1106
        %1108 = vmatprep.mubr.bf16.mxu0 0
        %1109 = vmatmul.mubr.bf16.gmra.mrb[0].mxu0 %v936
        %v1110 = vpop.f32.mrb[0].mxu0
        %v1111 = vadd.f32 0.0, %v1110
        %v1112 = vpop.f32.mrb[0].mxu0
        %v1113 = vadd.f32 0.0, %v1112
        %v1114 = vpop.f32.mrb[0].mxu0
        %v1115 = vadd.f32 0.0, %v1114
        %v1116 = vpop.f32.mrb[0].mxu0
        %v1117 = vadd.f32 0.0, %v1116
        %1118 = vmatprep.mubr.bf16.mxu0 0
        %1119 = vmatmul.mubr.bf16.gmra.mrb[0].mxu0 %v937
        %v1120 = vpop.f32.mrb[0].mxu0
        %v1121 = vadd.f32 0.0, %v1120
        %v1122 = vpop.f32.mrb[0].mxu0
        %v1123 = vadd.f32 0.0, %v1122
        %v1124 = vpop.f32.mrb[0].mxu0
        %v1125 = vadd.f32 0.0, %v1124
        %v1126 = vpop.f32.mrb[0].mxu0
        %v1127 = vadd.f32 0.0, %v1126
        %1128 = vmatprep.mubr.bf16.mxu0 0
        %1129 = vmatmul.mubr.bf16.gmra.mrb[0].mxu0 %v938
        %v1130 = vpop.f32.mrb[0].mxu0
        %v1131 = vadd.f32 0.0, %v1130
        %v1132 = vpop.f32.mrb[0].mxu0
        %v1133 = vadd.f32 0.0, %v1132
        %v1134 = vpop.f32.mrb[0].mxu0
        %v1135 = vadd.f32 0.0, %v1134
        %v1136 = vpop.f32.mrb[0].mxu0
        %v1137 = vadd.f32 0.0, %v1136
        %1138 = vmatprep.mubr.bf16.mxu0 0
        %1139 = vmatmul.mubr.bf16.gmra.mrb[0].mxu0 %v939
        %v1140 = vpop.f32.mrb[0].mxu0
        %v1141 = vadd.f32 0.0, %v1140
        %v1142 = vpop.f32.mrb[0].mxu0
        %v1143 = vadd.f32 0.0, %v1142
        %v1144 = vpop.f32.mrb[0].mxu0
        %v1145 = vadd.f32 0.0, %v1144
        %v1146 = vpop.f32.mrb[0].mxu0
        %v1147 = vadd.f32 0.0, %v1146
        %1148 = vdwg.mxu0
        %1149 = vst [vmem:[%s349] sm:$0xff] %v1071
        %1150 = vst [vmem:[%s349 + $0x8] sm:$0xff] %v1073
        %1151 = vst [vmem:[%s349 + $0x10] sm:$0xff] %v1075
        %1152 = vst [vmem:[%s349 + $0x18] sm:$0xff] %v1077
        %1153 = vst [vmem:[%s349 + $0x20] sm:$0xff] %v1081
        %1154 = vst [vmem:[%s349 + $0x28] sm:$0xff] %v1083
        %1155 = vst [vmem:[%s349 + $0x30] sm:$0xff] %v1085
        %1156 = vst [vmem:[%s349 + $0x38] sm:$0xff] %v1087
        %1157 = vst [vmem:[%s349 + $0x40] sm:$0xff] %v1091
        %1158 = vst [vmem:[%s349 + $0x48] sm:$0xff] %v1093
        %1159 = vst [vmem:[%s349 + $0x50] sm:$0xff] %v1095
        %1160 = vst [vmem:[%s349 + $0x58] sm:$0xff] %v1097
        %1161 = vst [vmem:[%s349 + $0x60] sm:$0xff] %v1101
        %1162 = vst [vmem:[%s349 + $0x68] sm:$0xff] %v1103
        %1163 = vst [vmem:[%s349 + $0x70] sm:$0xff] %v1105
        %1164 = vst [vmem:[%s349 + $0x78] sm:$0xff] %v1107
        %1165 = vst [vmem:[%s349 + $0x80] sm:$0xff] %v1111
        %1166 = vst [vmem:[%s349 + $0x88] sm:$0xff] %v1113
        %1167 = vst [vmem:[%s349 + $0x90] sm:$0xff] %v1115
        %1168 = vst [vmem:[%s349 + $0x98] sm:$0xff] %v1117
        %1169 = vst [vmem:[%s349 + $0xa0] sm:$0xff] %v1121
        %1170 = vst [vmem:[%s349 + $0xa8] sm:$0xff] %v1123
        %1171 = vst [vmem:[%s349 + $0xb0] sm:$0xff] %v1125
        %1172 = vst [vmem:[%s349 + $0xb8] sm:$0xff] %v1127
        %1173 = vst [vmem:[%s349 + $0xc0] sm:$0xff] %v1131
        %1174 = vst [vmem:[%s349 + $0xc8] sm:$0xff] %v1133
        %1175 = vst [vmem:[%s349 + $0xd0] sm:$0xff] %v1135
        %1176 = vst [vmem:[%s349 + $0xd8] sm:$0xff] %v1137
        %1177 = vst [vmem:[%s349 + $0xe0] sm:$0xff] %v1141
        %1178 = vst [vmem:[%s349 + $0xe8] sm:$0xff] %v1143
        %1179 = vst [vmem:[%s349 + $0xf0] sm:$0xff] %v1145
        %1180 = vst [vmem:[%s349 + $0xf8] sm:$0xff] %v1147
        %s1181 = sand.u32 %s154, 1
        %s1182 = scalar_lea.sflag [#allocation4], %s1181
        %s1183 = sand.u32 %s154, 1
        %s1184 = smul.addr %s1183, 128
        %s1185 = scalar_lea.vmem [#allocation10], %s1184
        %s1186 = sand.u32 %s180, 1
        %s1187 = scalar_lea.sflag [#allocation12], %s1186
        %s1188 = sand.u32 %s180, 1
        %s1189 = smul.addr %s1188, 256
        %s1190 = scalar_lea.vmem [#allocation11], %s1189
        // Predicated region
        $region57: #{tpu_custom_call.1} parent=39 // pred_check
          %p1191 = pneg %p164
        $region58: #{tpu_custom_call.1} parent=39 // pred_check_branch
          %1193 = sbr.rel (%p1191) target = $region60
        $region59: #{tpu_custom_call.1} parent=39 // pred_region
          %s1194 = smul.u32 16, %s31
          %s1196 = ssub.s32 2048, 2048
          %1197 = vsyncadd %s1182, %s1196
          %s1198 = smul.addr %s1194, 128
          %s1199 = scalar_lea.hbm %s5, %s1198
          %s1200 = sshll.u32 %s1185, 4
          %s1201 = int_to_ptr.vmem [resolvable:$true] %s1200
          %1206 = dma.vmem_to_hbm [thread:$0]  %s1201, 2048, %s1199, %s1182, 128, 128, 8
        $region60: #{tpu_custom_call.1} parent=39 // pred_fallthru
          _
        // Predicated region
        $region61: #{tpu_custom_call.1} parent=39 // pred_check
          %p1207 = pneg %p190
        $region62: #{tpu_custom_call.1} parent=39 // pred_check_branch
          %1209 = sbr.rel (%p1207) target = $region64
        $region63: #{tpu_custom_call.1} parent=39 // pred_region
          %s1210 = smul.u32 16, %s31
          %s1212 = ssub.s32 4096, 4096
          %1213 = vsyncadd %s1187, %s1212
          %s1214 = smul.addr %s1210, 2
          %s1215 = smul.addr %s1214, 128
          %s1216 = scalar_lea.hbm %s6, %s1215
          %s1217 = sshll.u32 %s1190, 4
          %s1218 = int_to_ptr.vmem [resolvable:$true] %s1217
          %1223 = dma.vmem_to_hbm [thread:$0]  %s1218, 4096, %s1216, %s1187, 256, 256, 16
        $region64: #{tpu_custom_call.1} parent=39 // pred_fallthru
          _
      $region40: #{tpu_custom_call.1} parent=5 // pred_fallthru
        _
      %p1224 = scmp.le.s32.totalorder 2, %s26
      // Predicated region
      $region65: #{tpu_custom_call.1} parent=5 // pred_check
        %p1225 = pneg %p1224
      $region66: #{tpu_custom_call.1} parent=5 // pred_check_branch
        %1227 = sbr.rel (%p1225) target = $region68
      $region67: #{tpu_custom_call.1} parent=5 // pred_region
        %s1228 = ssub.s32 %s26, 2
        // Predicated region
        $region69: #{tpu_custom_call.1} parent=67 // pred_check
          %p1229 = pneg %p170
        $region70: #{tpu_custom_call.1} parent=67 // pred_check_branch
          %1231 = sbr.rel (%p1229) target = $region72
        $region71: #{tpu_custom_call.1} parent=67 // pred_region
          %s1232 = sand.u32 %s155, 1
          %s1233 = scalar_lea.sflag [#allocation4], %s1232
          %s1234 = sand.u32 %s155, 1
          %s1235 = smul.addr %s1234, 128
          %s1236 = scalar_lea.vmem [#allocation10], %s1235
          %1237 = dma.done %s1233, 2048
        $region72: #{tpu_custom_call.1} parent=67 // pred_fallthru
          _
        // Predicated region
        $region73: #{tpu_custom_call.1} parent=67 // pred_check
          %p1238 = pneg %p196
        $region74: #{tpu_custom_call.1} parent=67 // pred_check_branch
          %1240 = sbr.rel (%p1238) target = $region76
        $region75: #{tpu_custom_call.1} parent=67 // pred_region
          %s1241 = sand.u32 %s181, 1
          %s1242 = scalar_lea.sflag [#allocation12], %s1241
          %s1243 = sand.u32 %s181, 1
          %s1244 = smul.addr %s1243, 256
          %s1245 = scalar_lea.vmem [#allocation11], %s1244
          %1246 = dma.done %s1242, 4096
        $region76: #{tpu_custom_call.1} parent=67 // pred_fallthru
          _
      $region68: #{tpu_custom_call.1} parent=5 // pred_fallthru
        _
    $region6: #{tpu_custom_call.1} parent=1 // loop_footer
      %s30 = sadd.s32 1, %s26
    $region7: #{tpu_custom_call.1} parent=1 // loop_footer_branch
      %25 = sbr.rel target = $region3
    $region8: #{tpu_custom_call.1} parent=1 // loop_exit
      _
    %1247 = vsyncpa [#allocation3], 1
    %s1248 = scalar_lea.sflag [#allocation3], 1
    %1249 = vsyncpa %s1248, 1
    %1250 = vsyncpa [#allocation6], 1
    %s1251 = scalar_lea.sflag [#allocation6], 1
    %1252 = vsyncpa %s1251, 1
    %1253 = vsyncpa [#allocation9], 1
    %1254 = vsyncpa [#allocation4], 1
    %s1255 = scalar_lea.sflag [#allocation4], 1
    %1256 = vsyncpa %s1255, 1
    %1257 = vsyncpa [#allocation12], 1
    %s1258 = scalar_lea.sflag [#allocation12], 1
    %1259 = vsyncpa %s1258, 1

// kernel: tpu_custom_call.1
$region0: #{tpu_custom_call.1}
  #allocation0 [shape = 'u32[]', space=smem, size = 0x4, offset = 0x4, fixed_abs, tag = 'smem constant byte address 0x4 - core index']
  #allocation1 [shape = 'u32[144,128]{1,0:T(1,128)}', space=vmem, size = 0x12000, scoped, tag = 'internal scratch']
  %s0 = inlined_call_operand.hbm [shape: f32[512,128], index: 0, kind: input, shape index: {}]
  %s1 = inlined_call_operand.hbm [shape: f32[512,128], index: 1, kind: input, shape index: {}]
  %s2 = inlined_call_operand.hbm [shape: bf16[128,128], index: 2, kind: input, shape index: {}]
  %s3 = inlined_call_operand.vmem [shape: f32[1,128], index: 3, kind: input, shape index: {}]
  %s4 = inlined_call_operand.hbm [shape: bf16[128,256], index: 4, kind: input, shape index: {}]
  %s5 = inlined_call_operand.hbm [shape: f32[512,128], index: 5, kind: output, shape index: {0}]
  %s6 = inlined_call_operand.hbm [shape: f32[512,256], index: 6, kind: output, shape index: {1}]
  %7 = xla_tuple %s5, %s6
  %s8 = sld [smem:[#allocation0]]
  $region77: #{tpu_custom_call.1} parent=0
    _
  %s10 = ssub.s32 1, %s8
  %s11 = scalar_select 0, %s10, %s8
  $region1: #{tpu_custom_call.1} parent=0
    #allocation2 [shape = 'u8[131072]{0}', space=vmem, size = 0x20000, scoped, tag = 'input window, operand 0']
    #allocation3 [shape = 's32[2]{0}', space=sflag, size = 0x8, scoped, tag = 'scoped memory for tpu_custom_call.1']
    #allocation4 [shape = 's32[2]{0}', space=sflag, size = 0x8, scoped, tag = 'scoped memory for tpu_custom_call.1']
    #allocation5 [shape = 'u8[131072]{0}', space=vmem, size = 0x20000, scoped, tag = 'input window, operand 1']
    #allocation6 [shape = 's32[2]{0}', space=sflag, size = 0x8, scoped, tag = 'scoped memory for tpu_custom_call.1']
    #allocation7 [shape = 'u8[32768]{0}', space=vmem, size = 0x8000, scoped, tag = 'input window, operand 2, single buffered']
    #allocation8 [shape = 'u8[65536]{0}', space=vmem, size = 0x10000, scoped, tag = 'input window, operand 4, single buffered']
    #allocation9 [shape = 's32[1]{0}', space=sflag, size = 0x4, scoped, tag = 'scoped memory for tpu_custom_call.1']
    #allocation10 [shape = 'u8[131072]{0}', space=vmem, size = 0x20000, scoped, tag = 'output window, operand 0']
    #allocation11 [shape = 'u8[262144]{0}', space=vmem, size = 0x40000, scoped, tag = 'output window, operand 1']
    #allocation12 [shape = 's32[2]{0}', space=sflag, size = 0x8, scoped, tag = 'scoped memory for tpu_custom_call.1']
    %12 = vsyncpa [#allocation3], 0
    %s13 = scalar_lea.sflag [#allocation3], 1
    %14 = vsyncpa %s13, 0
    %15 = vsyncpa [#allocation6], 0
    %s16 = scalar_lea.sflag [#allocation6], 1
    %17 = vsyncpa %s16, 0
    %18 = vsyncpa [#allocation9], 0
    %19 = vsyncpa [#allocation4], 0
    %s20 = scalar_lea.sflag [#allocation4], 1
    %21 = vsyncpa %s20, 0
    %22 = vsyncpa [#allocation12], 0
    %s23 = scalar_lea.sflag [#allocation12], 1
    %24 = vsyncpa %s23, 0
    loop: start=0, step=1, limit=6
    $region2: #{tpu_custom_call.1} parent=1 // loop_pre_header
      _
    $region3: #{tpu_custom_call.1} parent=1 // loop_header
      %s26 = sphi 0, %s30
      %p27 = scmp.ge.s32.totalorder %s26, 6
      %s36 = sphi 0, %s38
      %s39 = sphi 0, %s36
      %s40 = sphi 0, %s39
      %s56 = sphi 0, %s40
      %s62 = sphi 0, %s64
      %s65 = sphi 0, %s62
      %s66 = sphi 0, %s65
      %s82 = sphi 0, %s66
      %s86 = sphi 0, %s86
      %s88 = sphi 0, %s86
      %s89 = sphi 0, %s88
      %s103 = sphi 0, %s89
      %s107 = sphi 0, %s107
      %s109 = sphi 0, %s107
      %s110 = sphi 0, %s109
      %s124 = sphi 0, %s110
      %s128 = sphi 0, %s128
      %s130 = sphi 0, %s128
      %s131 = sphi 0, %s130
      %s145 = sphi 0, %s131
      %s151 = sphi 0, %s153
      %s154 = sphi 0, %s151
      %s155 = sphi 0, %s154
      %s171 = sphi 0, %s155
      %s177 = sphi 0, %s179
      %s180 = sphi 0, %s177
      %s181 = sphi 0, %s180
      %s197 = sphi 0, %s181
    $region4: #{tpu_custom_call.1} parent=1 // loop_header_branch
      %29 = sbr.rel (%p27) target = $region8
    $region5: #{tpu_custom_call.1} parent=1 // loop_body
      %s31 = ssub.s32 %s26, 1
      %s32 = ssub.s32 %s26, 2
      %s33 = sadd.s32 %s26, 1
      %s34 = ssub.s32 %s26, %s33
      %p35 = scmp.eq.s32.totalorder %s34, 0
      %s37 = sadd.s32 %s36, 1
      %s38 = scalar_select %p35, %s36, %s37
      %p41 = pneg %p35
      %p42 = scmp.eq.s32.totalorder %s26, 3
      %p43 = por %p41, %p42
      %p44 = scmp.ne.s32.totalorder %s36, %s39
      %p45 = scmp.eq.s32.totalorder %s26, 0
      %p46 = por %p44, %p45
      %p47 = scmp.ne.s32.totalorder %s36, %s39
      %p48 = scmp.eq.s32.totalorder %s31, 3
      %p49 = por %p47, %p48
      %p50 = scmp.ne.s32.totalorder %s39, %s40
      %p51 = scmp.eq.s32.totalorder %s31, 0
      %p52 = por %p50, %p51
      %p53 = scmp.ne.s32.totalorder %s39, %s40
      %p54 = scmp.eq.s32.totalorder %s32, 3
      %p55 = por %p53, %p54
      %p57 = scmp.ne.s32.totalorder %s40, %s56
      %p58 = scmp.eq.s32.totalorder %s32, 0
      %p59 = por %p57, %p58
      %s60 = ssub.s32 %s26, %s33
      %p61 = scmp.eq.s32.totalorder %s60, 0
      %s63 = sadd.s32 %s62, 1
      %s64 = scalar_select %p61, %s62, %s63
      %p67 = pneg %p61
      %p68 = scmp.eq.s32.totalorder %s26, 3
      %p69 = por %p67, %p68
      %p70 = scmp.ne.s32.totalorder %s62, %s65
      %p71 = scmp.eq.s32.totalorder %s26, 0
      %p72 = por %p70, %p71
      %p73 = scmp.ne.s32.totalorder %s62, %s65
      %p74 = scmp.eq.s32.totalorder %s31, 3
      %p75 = por %p73, %p74
      %p76 = scmp.ne.s32.totalorder %s65, %s66
      %p77 = scmp.eq.s32.totalorder %s31, 0
      %p78 = por %p76, %p77
      %p79 = scmp.ne.s32.totalorder %s65, %s66
      %p80 = scmp.eq.s32.totalorder %s32, 3
      %p81 = por %p79, %p80
      %p83 = scmp.ne.s32.totalorder %s66, %s82
      %p84 = scmp.eq.s32.totalorder %s32, 0
      %p85 = por %p83, %p84
      %s87 = sadd.s32 %s86, 1
      %p90 = scmp.eq.s32.totalorder %s26, 3
      %p91 = scmp.ne.s32.totalorder %s86, %s88
      %p92 = scmp.eq.s32.totalorder %s26, 0
      %p93 = por %p91, %p92
      %p94 = scmp.ne.s32.totalorder %s86, %s88
      %p95 = scmp.eq.s32.totalorder %s31, 3
      %p96 = por %p94, %p95
      %p97 = scmp.ne.s32.totalorder %s88, %s89
      %p98 = scmp.eq.s32.totalorder %s31, 0
      %p99 = por %p97, %p98
      %p100 = scmp.ne.s32.totalorder %s88, %s89
      %p101 = scmp.eq.s32.totalorder %s32, 3
      %p102 = por %p100, %p101
      %p104 = scmp.ne.s32.totalorder %s89, %s103
      %p105 = scmp.eq.s32.totalorder %s32, 0
      %p106 = por %p104, %p105
      %s108 = sadd.s32 %s107, 1
      %p111 = scmp.eq.s32.totalorder %s26, 3
      %p112 = scmp.ne.s32.totalorder %s107, %s109
      %p113 = scmp.eq.s32.totalorder %s26, 0
      %p114 = por %p112, %p113
      %p115 = scmp.ne.s32.totalorder %s107, %s109
      %p116 = scmp.eq.s32.totalorder %s31, 3
      %p117 = por %p115, %p116
      %p118 = scmp.ne.s32.totalorder %s109, %s110
      %p119 = scmp.eq.s32.totalorder %s31, 0
      %p120 = por %p118, %p119
      %p121 = scmp.ne.s32.totalorder %s109, %s110
      %p122 = scmp.eq.s32.totalorder %s32, 3
      %p123 = por %p121, %p122
      %p125 = scmp.ne.s32.totalorder %s110, %s124
      %p126 = scmp.eq.s32.totalorder %s32, 0
      %p127 = por %p125, %p126
      %s129 = sadd.s32 %s128, 1
      %p132 = scmp.eq.s32.totalorder %s26, 3
      %p133 = scmp.ne.s32.totalorder %s128, %s130
      %p134 = scmp.eq.s32.totalorder %s26, 0
      %p135 = por %p133, %p134
      %p136 = scmp.ne.s32.totalorder %s128, %s130
      %p137 = scmp.eq.s32.totalorder %s31, 3
      %p138 = por %p136, %p137
      %p139 = scmp.ne.s32.totalorder %s130, %s131
      %p140 = scmp.eq.s32.totalorder %s31, 0
      %p141 = por %p139, %p140
      %p142 = scmp.ne.s32.totalorder %s130, %s131
      %p143 = scmp.eq.s32.totalorder %s32, 3
      %p144 = por %p142, %p143
      %p146 = scmp.ne.s32.totalorder %s131, %s145
      %p147 = scmp.eq.s32.totalorder %s32, 0
      %p148 = por %p146, %p147
      %s149 = ssub.s32 %s26, %s33
      %p150 = scmp.eq.s32.totalorder %s149, 0
      %s152 = sadd.s32 %s151, 1
      %s153 = scalar_select %p150, %s151, %s152
      %p156 = pneg %p150
      %p157 = scmp.eq.s32.totalorder %s26, 3
      %p158 = por %p156, %p157
      %p159 = scmp.ne.s32.totalorder %s151, %s154
      %p160 = scmp.eq.s32.totalorder %s26, 0
      %p161 = por %p159, %p160
      %p162 = scmp.ne.s32.totalorder %s151, %s154
      %p163 = scmp.eq.s32.totalorder %s31, 3
      %p164 = por %p162, %p163
      %p165 = scmp.ne.s32.totalorder %s154, %s155
      %p166 = scmp.eq.s32.totalorder %s31, 0
      %p167 = por %p165, %p166
      %p168 = scmp.ne.s32.totalorder %s154, %s155
      %p169 = scmp.eq.s32.totalorder %s32, 3
      %p170 = por %p168, %p169
      %p172 = scmp.ne.s32.totalorder %s155, %s171
      %p173 = scmp.eq.s32.totalorder %s32, 0
      %p174 = por %p172, %p173
      %s175 = ssub.s32 %s26, %s33
      %p176 = scmp.eq.s32.totalorder %s175, 0
      %s178 = sadd.s32 %s177, 1
      %s179 = scalar_select %p176, %s177, %s178
      %p182 = pneg %p176
      %p183 = scmp.eq.s32.totalorder %s26, 3
      %p184 = por %p182, %p183
      %p185 = scmp.ne.s32.totalorder %s177, %s180
      %p186 = scmp.eq.s32.totalorder %s26, 0
      %p187 = por %p185, %p186
      %p188 = scmp.ne.s32.totalorder %s177, %s180
      %p189 = scmp.eq.s32.totalorder %s31, 3
      %p190 = por %p188, %p189
      %p191 = scmp.ne.s32.totalorder %s180, %s181
      %p192 = scmp.eq.s32.totalorder %s31, 0
      %p193 = por %p191, %p192
      %p194 = scmp.ne.s32.totalorder %s180, %s181
      %p195 = scmp.eq.s32.totalorder %s32, 3
      %p196 = por %p194, %p195
      %p198 = scmp.ne.s32.totalorder %s181, %s197
      %p199 = scmp.eq.s32.totalorder %s32, 0
      %p200 = por %p198, %p199
      %p201 = scmp.le.s32.totalorder 1, %s26
      %p202 = scmp.lt.s32.totalorder %s26, 5
      %p203 = pnand %p201, %p202
      %p204 = pneg %p203
      // Predicated region
      $region9: #{tpu_custom_call.1} parent=5 // pred_check
        _
      $region10: #{tpu_custom_call.1} parent=5 // pred_check_branch
        %206 = sbr.rel (%p203) target = $region12
      $region11: #{tpu_custom_call.1} parent=5 // pred_region
        %s207 = ssub.s32 %s26, 1
        // Predicated region
        $region13: #{tpu_custom_call.1} parent=11 // pred_check
          %p208 = pneg %p99
        $region14: #{tpu_custom_call.1} parent=11 // pred_check_branch
          %210 = sbr.rel (%p208) target = $region16
        $region15: #{tpu_custom_call.1} parent=11 // pred_region
          %s212 = ssub.s32 1024, 1024
          %213 = vsyncadd [#allocation6], %s212
          %s214 = sshll.u32 [#allocation7], 4
          %s215 = int_to_ptr.vmem [resolvable:$true] %s214
          %220 = dma.hbm_to_vmem [thread:$0]  %s2, 1024, %s215, [#allocation6], 64, 64, 4
        $region16: #{tpu_custom_call.1} parent=11 // pred_fallthru
          _
        // Predicated region
        $region17: #{tpu_custom_call.1} parent=11 // pred_check
          %p221 = pneg %p120
        $region18: #{tpu_custom_call.1} parent=11 // pred_check_branch
          %223 = sbr.rel (%p221) target = $region20
        $region19: #{tpu_custom_call.1} parent=11 // pred_region
          _
        $region20: #{tpu_custom_call.1} parent=11 // pred_fallthru
          _
        // Predicated region
        $region21: #{tpu_custom_call.1} parent=11 // pred_check
          %p224 = pneg %p141
        $region22: #{tpu_custom_call.1} parent=11 // pred_check_branch
          %226 = sbr.rel (%p224) target = $region24
        $region23: #{tpu_custom_call.1} parent=11 // pred_region
          %s228 = ssub.s32 2048, 2048
          %229 = vsyncadd [#allocation9], %s228
          %s230 = sshll.u32 [#allocation8], 4
          %s231 = int_to_ptr.vmem [resolvable:$true] %s230
          %236 = dma.hbm_to_vmem [thread:$0]  %s4, 2048, %s231, [#allocation9], 128, 128, 8
        $region24: #{tpu_custom_call.1} parent=11 // pred_fallthru
          _
      $region12: #{tpu_custom_call.1} parent=5 // pred_fallthru
        _
      %p237 = scmp.lt.s32.totalorder %s26, 4
      // Predicated region
      $region25: #{tpu_custom_call.1} parent=5 // pred_check
        %p238 = pneg %p237
      $region26: #{tpu_custom_call.1} parent=5 // pred_check_branch
        %240 = sbr.rel (%p238) target = $region28
      $region27: #{tpu_custom_call.1} parent=5 // pred_region
        // Predicated region
        $region29: #{tpu_custom_call.1} parent=27 // pred_check
          %p241 = pneg %p46
        $region30: #{tpu_custom_call.1} parent=27 // pred_check_branch
          %243 = sbr.rel (%p241) target = $region32
        $region31: #{tpu_custom_call.1} parent=27 // pred_region
          %s244 = sand.u32 %s36, 1
          %s245 = scalar_lea.sflag [#allocation3], %s244
          %s246 = sand.u32 %s36, 1
          %s247 = smul.addr %s246, 128
          %s248 = scalar_lea.vmem [#allocation2], %s247
          %s249 = smul.u32 16, %s26
          %s251 = ssub.s32 2048, 2048
          %252 = vsyncadd %s245, %s251
          %s253 = smul.addr %s249, 128
          %s254 = scalar_lea.hbm %s0, %s253
          %s255 = sshll.u32 %s248, 4
          %s256 = int_to_ptr.vmem [resolvable:$true] %s255
          %261 = dma.hbm_to_vmem [thread:$0]  %s254, 2048, %s256, %s245, 128, 128, 8
        $region32: #{tpu_custom_call.1} parent=27 // pred_fallthru
          _
        // Predicated region
        $region33: #{tpu_custom_call.1} parent=27 // pred_check
          %p262 = pneg %p72
        $region34: #{tpu_custom_call.1} parent=27 // pred_check_branch
          %264 = sbr.rel (%p262) target = $region36
        $region35: #{tpu_custom_call.1} parent=27 // pred_region
          %s265 = sand.u32 %s26, 1
          %s266 = scalar_lea.sflag [#allocation6], %s265
          %s267 = sand.u32 %s62, 1
          %s268 = smul.addr %s267, 128
          %s269 = scalar_lea.vmem [#allocation5], %s268
          %s270 = smul.u32 16, %s26
          %s272 = ssub.s32 2048, 2048
          %273 = vsyncadd %s266, %s272
          %s274 = smul.addr %s270, 128
          %s275 = scalar_lea.hbm %s1, %s274
          %s276 = sshll.u32 %s269, 4
          %s277 = int_to_ptr.vmem [resolvable:$true] %s276
          %282 = dma.hbm_to_vmem [thread:$0]  %s275, 2048, %s277, %s266, 128, 128, 8
        $region36: #{tpu_custom_call.1} parent=27 // pred_fallthru
          _
      $region28: #{tpu_custom_call.1} parent=5 // pred_fallthru
        _
      %p283 = scmp.le.s32.totalorder 1, %s26
      %p284 = scmp.lt.s32.totalorder %s26, 5
      %p285 = pnand %p283, %p284
      %p286 = pneg %p285
      // Predicated region
      $region37: #{tpu_custom_call.1} parent=5 // pred_check
        _
      $region38: #{tpu_custom_call.1} parent=5 // pred_check_branch
        %288 = sbr.rel (%p285) target = $region40
      $region39: #{tpu_custom_call.1} parent=5 // pred_region
        %s289 = ssub.s32 %s26, 1
        %s290 = sand.u32 %s39, 1
        %s291 = scalar_lea.sflag [#allocation3], %s290
        %s292 = sand.u32 %s39, 1
        %s293 = smul.addr %s292, 128
        %s294 = scalar_lea.vmem [#allocation2], %s293
        // Predicated region
        $region41: #{tpu_custom_call.1} parent=39 // pred_check
          %p295 = pneg %p52
        $region42: #{tpu_custom_call.1} parent=39 // pred_check_branch
          %297 = sbr.rel (%p295) target = $region44
        $region43: #{tpu_custom_call.1} parent=39 // pred_region
          %298 = dma.done %s291, 2048
        $region44: #{tpu_custom_call.1} parent=39 // pred_fallthru
          _
        %s299 = sand.u32 %s31, 1
        %s300 = scalar_lea.sflag [#allocation6], %s299
        %s301 = sand.u32 %s65, 1
        %s302 = smul.addr %s301, 128
        %s303 = scalar_lea.vmem [#allocation5], %s302
        // Predicated region
        $region45: #{tpu_custom_call.1} parent=39 // pred_check
          %p304 = pneg %p78
        $region46: #{tpu_custom_call.1} parent=39 // pred_check_branch
          %306 = sbr.rel (%p304) target = $region48
        $region47: #{tpu_custom_call.1} parent=39 // pred_region
          %307 = dma.done %s300, 2048
        $region48: #{tpu_custom_call.1} parent=39 // pred_fallthru
          _
        // Predicated region
        $region49: #{tpu_custom_call.1} parent=39 // pred_check
          %p308 = pneg %p99
        $region50: #{tpu_custom_call.1} parent=39 // pred_check_branch
          %310 = sbr.rel (%p308) target = $region52
        $region51: #{tpu_custom_call.1} parent=39 // pred_region
          %311 = dma.done [#allocation6], 1024
        $region52: #{tpu_custom_call.1} parent=39 // pred_fallthru
          _
        // Predicated region
        $region53: #{tpu_custom_call.1} parent=39 // pred_check
          %p312 = pneg %p141
        $region54: #{tpu_custom_call.1} parent=39 // pred_check_branch
          %314 = sbr.rel (%p312) target = $region56
        $region55: #{tpu_custom_call.1} parent=39 // pred_region
          %315 = dma.done [#allocation9], 2048
        $region56: #{tpu_custom_call.1} parent=39 // pred_fallthru
          _
        %s316 = sand.u32 %s39, 1
        %s317 = scalar_lea.sflag [#allocation3], %s316
        %s318 = sand.u32 %s39, 1
        %s319 = smul.addr %s318, 128
        %s320 = scalar_lea.vmem [#allocation2], %s319
        %p321 = pneg %p52
        %p322 = pneg %p49
        %s323 = sand.u32 %s31, 1
        %s324 = scalar_lea.sflag [#allocation6], %s323
        %s325 = sand.u32 %s65, 1
        %s326 = smul.addr %s325, 128
        %s327 = scalar_lea.vmem [#allocation5], %s326
        %p328 = pneg %p78
        %p329 = pneg %p75
        %p330 = pneg %p99
        %p331 = pneg %p96
        %p332 = pneg %p120
        %p333 = pneg %p117
        %p334 = pneg %p141
        %p335 = pneg %p138
        %p336 = pneg %p167
        %p337 = pneg %p164
        %s338 = sand.u32 %s154, 1
        %s339 = scalar_lea.sflag [#allocation4], %s338
        %s340 = sand.u32 %s154, 1
        %s341 = smul.addr %s340, 128
        %s342 = scalar_lea.vmem [#allocation10], %s341
        %p343 = pneg %p193
        %p344 = pneg %p190
        %s345 = sand.u32 %s180, 1
        %s346 = scalar_lea.sflag [#allocation12], %s345
        %s347 = sand.u32 %s180, 1
        %s348 = smul.addr %s347, 256
        %s349 = scalar_lea.vmem [#allocation11], %s348
        %s350 = smul.u32 16, %s31
        %s351 = smul.u32 16, %s31
        %s352 = smul.u32 16, %s31
        %s353 = smul.u32 16, %s31
        %v355 = vld [vmem:[%s294] sm:$0xff]
        %v356 = vld [vmem:[%s294 + $0x8] sm:$0xff]
        %v357 = vld [vmem:[%s294 + $0x10] sm:$0xff]
        %v358 = vld [vmem:[%s294 + $0x18] sm:$0xff]
        %v359 = vld [vmem:[%s294 + $0x20] sm:$0xff]
        %v360 = vld [vmem:[%s294 + $0x28] sm:$0xff]
        %v361 = vld [vmem:[%s294 + $0x30] sm:$0xff]
        %v362 = vld [vmem:[%s294 + $0x38] sm:$0xff]
        %v363 = vld [vmem:[%s294 + $0x40] sm:$0xff]
        %v364 = vld [vmem:[%s294 + $0x48] sm:$0xff]
        %v365 = vld [vmem:[%s294 + $0x50] sm:$0xff]
        %v366 = vld [vmem:[%s294 + $0x58] sm:$0xff]
        %v367 = vld [vmem:[%s294 + $0x60] sm:$0xff]
        %v368 = vld [vmem:[%s294 + $0x68] sm:$0xff]
        %v369 = vld [vmem:[%s294 + $0x70] sm:$0xff]
        %v370 = vld [vmem:[%s294 + $0x78] sm:$0xff]
        %371 = vadd.xlane.f32.xlu0 %v355
        %v372 = vpop.xlane.xlu0 %371
        %373 = vadd.xlane.f32.xlu0 %v356
        %v374 = vpop.xlane.xlu0 %373
        %375 = vadd.xlane.f32.xlu0 %v357
        %v376 = vpop.xlane.xlu0 %375
        %377 = vadd.xlane.f32.xlu0 %v358
        %v378 = vpop.xlane.xlu0 %377
        %379 = vadd.xlane.f32.xlu0 %v359
        %v380 = vpop.xlane.xlu0 %379
        %381 = vadd.xlane.f32.xlu0 %v360
        %v382 = vpop.xlane.xlu0 %381
        %383 = vadd.xlane.f32.xlu0 %v361
        %v384 = vpop.xlane.xlu0 %383
        %385 = vadd.xlane.f32.xlu0 %v362
        %v386 = vpop.xlane.xlu0 %385
        %387 = vadd.xlane.f32.xlu0 %v363
        %v388 = vpop.xlane.xlu0 %387
        %389 = vadd.xlane.f32.xlu0 %v364
        %v390 = vpop.xlane.xlu0 %389
        %391 = vadd.xlane.f32.xlu0 %v365
        %v392 = vpop.xlane.xlu0 %391
        %393 = vadd.xlane.f32.xlu0 %v366
        %v394 = vpop.xlane.xlu0 %393
        %395 = vadd.xlane.f32.xlu0 %v367
        %v396 = vpop.xlane.xlu0 %395
        %397 = vadd.xlane.f32.xlu0 %v368
        %v398 = vpop.xlane.xlu0 %397
        %399 = vadd.xlane.f32.xlu0 %v369
        %v400 = vpop.xlane.xlu0 %399
        %401 = vadd.xlane.f32.xlu0 %v370
        %v402 = vpop.xlane.xlu0 %401
        %v403 = vrcp.pop 128.0
        %v404 = vmul.f32 %v372, %v403
        %v405 = vmul.f32 %v374, %v403
        %v406 = vmul.f32 %v376, %v403
        %v407 = vmul.f32 %v378, %v403
        %v408 = vmul.f32 %v380, %v403
        %v409 = vmul.f32 %v382, %v403
        %v410 = vmul.f32 %v384, %v403
        %v411 = vmul.f32 %v386, %v403
        %v412 = vmul.f32 %v388, %v403
        %v413 = vmul.f32 %v390, %v403
        %v414 = vmul.f32 %v392, %v403
        %v415 = vmul.f32 %v394, %v403
        %v416 = vmul.f32 %v396, %v403
        %v417 = vmul.f32 %v398, %v403
        %v418 = vmul.f32 %v400, %v403
        %v419 = vmul.f32 %v402, %v403
        %v420 = vsub.f32 %v355, %v404
        %v421 = vsub.f32 %v356, %v405
        %v422 = vsub.f32 %v357, %v406
        %v423 = vsub.f32 %v358, %v407
        %v424 = vsub.f32 %v359, %v408
        %v425 = vsub.f32 %v360, %v409
        %v426 = vsub.f32 %v361, %v410
        %v427 = vsub.f32 %v362, %v411
        %v428 = vsub.f32 %v363, %v412
        %v429 = vsub.f32 %v364, %v413
        %v430 = vsub.f32 %v365, %v414
        %v431 = vsub.f32 %v366, %v415
        %v432 = vsub.f32 %v367, %v416
        %v433 = vsub.f32 %v368, %v417
        %v434 = vsub.f32 %v369, %v418
        %v435 = vsub.f32 %v370, %v419
        %v436 = vmul.f32 %v420, %v420
        %v437 = vmul.f32 %v421, %v421
        %v438 = vmul.f32 %v422, %v422
        %v439 = vmul.f32 %v423, %v423
        %v440 = vmul.f32 %v424, %v424
        %v441 = vmul.f32 %v425, %v425
        %v442 = vmul.f32 %v426, %v426
        %v443 = vmul.f32 %v427, %v427
        %v444 = vmul.f32 %v428, %v428
        %v445 = vmul.f32 %v429, %v429
        %v446 = vmul.f32 %v430, %v430
        %v447 = vmul.f32 %v431, %v431
        %v448 = vmul.f32 %v432, %v432
        %v449 = vmul.f32 %v433, %v433
        %v450 = vmul.f32 %v434, %v434
        %v451 = vmul.f32 %v435, %v435
        %452 = vadd.xlane.f32.xlu0 %v436
        %v453 = vpop.xlane.xlu0 %452
        %454 = vadd.xlane.f32.xlu0 %v437
        %v455 = vpop.xlane.xlu0 %454
        %456 = vadd.xlane.f32.xlu0 %v438
        %v457 = vpop.xlane.xlu0 %456
        %458 = vadd.xlane.f32.xlu0 %v439
        %v459 = vpop.xlane.xlu0 %458
        %460 = vadd.xlane.f32.xlu0 %v440
        %v461 = vpop.xlane.xlu0 %460
        %462 = vadd.xlane.f32.xlu0 %v441
        %v463 = vpop.xlane.xlu0 %462
        %464 = vadd.xlane.f32.xlu0 %v442
        %v465 = vpop.xlane.xlu0 %464
        %466 = vadd.xlane.f32.xlu0 %v443
        %v467 = vpop.xlane.xlu0 %466
        %468 = vadd.xlane.f32.xlu0 %v444
        %v469 = vpop.xlane.xlu0 %468
        %470 = vadd.xlane.f32.xlu0 %v445
        %v471 = vpop.xlane.xlu0 %470
        %472 = vadd.xlane.f32.xlu0 %v446
        %v473 = vpop.xlane.xlu0 %472
        %474 = vadd.xlane.f32.xlu0 %v447
        %v475 = vpop.xlane.xlu0 %474
        %476 = vadd.xlane.f32.xlu0 %v448
        %v477 = vpop.xlane.xlu0 %476
        %478 = vadd.xlane.f32.xlu0 %v449
        %v479 = vpop.xlane.xlu0 %478
        %480 = vadd.xlane.f32.xlu0 %v450
        %v481 = vpop.xlane.xlu0 %480
        %482 = vadd.xlane.f32.xlu0 %v451
        %v483 = vpop.xlane.xlu0 %482
        %v484 = vmul.f32 %v453, %v403
        %v485 = vmul.f32 %v455, %v403
        %v486 = vmul.f32 %v457, %v403
        %v487 = vmul.f32 %v459, %v403
        %v488 = vmul.f32 %v461, %v403
        %v489 = vmul.f32 %v463, %v403
        %v490 = vmul.f32 %v465, %v403
        %v491 = vmul.f32 %v467, %v403
        %v492 = vmul.f32 %v469, %v403
        %v493 = vmul.f32 %v471, %v403
        %v494 = vmul.f32 %v473, %v403
        %v495 = vmul.f32 %v475, %v403
        %v496 = vmul.f32 %v477, %v403
        %v497 = vmul.f32 %v479, %v403
        %v498 = vmul.f32 %v481, %v403
        %v499 = vmul.f32 %v483, %v403
        %v500 = vadd.f32 %v484, 1e-05
        %v501 = vadd.f32 %v485, 1e-05
        %v502 = vadd.f32 %v486, 1e-05
        %v503 = vadd.f32 %v487, 1e-05
        %v504 = vadd.f32 %v488, 1e-05
        %v505 = vadd.f32 %v489, 1e-05
        %v506 = vadd.f32 %v490, 1e-05
        %v507 = vadd.f32 %v491, 1e-05
        %v508 = vadd.f32 %v492, 1e-05
        %v509 = vadd.f32 %v493, 1e-05
        %v510 = vadd.f32 %v494, 1e-05
        %v511 = vadd.f32 %v495, 1e-05
        %v512 = vadd.f32 %v496, 1e-05
        %v513 = vadd.f32 %v497, 1e-05
        %v514 = vadd.f32 %v498, 1e-05
        %v515 = vadd.f32 %v499, 1e-05
        %v516 = vrsqrt.pop %v500
        %v517 = vrsqrt.pop %v501
        %v518 = vrsqrt.pop %v502
        %v519 = vrsqrt.pop %v503
        %v520 = vrsqrt.pop %v504
        %v521 = vrsqrt.pop %v505
        %v522 = vrsqrt.pop %v506
        %v523 = vrsqrt.pop %v507
        %v524 = vrsqrt.pop %v508
        %v525 = vrsqrt.pop %v509
        %v526 = vrsqrt.pop %v510
        %v527 = vrsqrt.pop %v511
        %v528 = vrsqrt.pop %v512
        %v529 = vrsqrt.pop %v513
        %v530 = vrsqrt.pop %v514
        %v531 = vrsqrt.pop %v515
        %v532 = vmul.f32 %v420, %v516
        %v533 = vmul.f32 %v421, %v517
        %v534 = vmul.f32 %v422, %v518
        %v535 = vmul.f32 %v423, %v519
        %v536 = vmul.f32 %v424, %v520
        %v537 = vmul.f32 %v425, %v521
        %v538 = vmul.f32 %v426, %v522
        %v539 = vmul.f32 %v427, %v523
        %v540 = vmul.f32 %v428, %v524
        %v541 = vmul.f32 %v429, %v525
        %v542 = vmul.f32 %v430, %v526
        %v543 = vmul.f32 %v431, %v527
        %v544 = vmul.f32 %v432, %v528
        %v545 = vmul.f32 %v433, %v529
        %v546 = vmul.f32 %v434, %v530
        %v547 = vmul.f32 %v435, %v531
        %v548 = vpack.c.bf16 %v533, %v532
        %v549 = vpack.c.bf16 %v535, %v534
        %v550 = vpack.c.bf16 %v537, %v536
        %v551 = vpack.c.bf16 %v539, %v538
        %v552 = vpack.c.bf16 %v541, %v540
        %v553 = vpack.c.bf16 %v543, %v542
        %v554 = vpack.c.bf16 %v545, %v544
        %v555 = vpack.c.bf16 %v547, %v546
        %v556 = vld [vmem:[#allocation7] sm:$0xf]
        %v557 = vld [vmem:[#allocation7 + $0x4] sm:$0xf]
        %v558 = vld [vmem:[#allocation7 + $0x8] sm:$0xf]
        %v559 = vld [vmem:[#allocation7 + $0xc] sm:$0xf]
        %v560 = vld [vmem:[#allocation7 + $0x10] sm:$0xf]
        %v561 = vld [vmem:[#allocation7 + $0x14] sm:$0xf]
        %v562 = vld [vmem:[#allocation7 + $0x18] sm:$0xf]
        %v563 = vld [vmem:[#allocation7 + $0x1c] sm:$0xf]
        %v564 = vld [vmem:[#allocation7 + $0x20] sm:$0xf]
        %v565 = vld [vmem:[#allocation7 + $0x24] sm:$0xf]
        %v566 = vld [vmem:[#allocation7 + $0x28] sm:$0xf]
        %v567 = vld [vmem:[#allocation7 + $0x2c] sm:$0xf]
        %v568 = vld [vmem:[#allocation7 + $0x30] sm:$0xf]
        %v569 = vld [vmem:[#allocation7 + $0x34] sm:$0xf]
        %v570 = vld [vmem:[#allocation7 + $0x38] sm:$0xf]
        %v571 = vld [vmem:[#allocation7 + $0x3c] sm:$0xf]
        %v572 = vld [vmem:[%s3] sm:$0x1]
        %v574 = vlaneseq
        %v575 = vshrl.u32 %v574, 7
        %v576 = vsub.s32 0, %v575
        %v577 = vrot.slane %v572, %v576
        %v595 = vunpack.c.l.b16 %v556
        %v596 = vunpack.c.l.b16 %v557
        %v597 = vunpack.c.l.b16 %v558
        %v598 = vunpack.c.l.b16 %v559
        %v599 = vunpack.c.l.b16 %v560
        %v600 = vunpack.c.l.b16 %v561
        %v601 = vunpack.c.l.b16 %v562
        %v602 = vunpack.c.l.b16 %v563
        %v603 = vunpack.c.l.b16 %v564
        %v604 = vunpack.c.l.b16 %v565
        %v605 = vunpack.c.l.b16 %v566
        %v606 = vunpack.c.l.b16 %v567
        %v607 = vunpack.c.l.b16 %v568
        %v608 = vunpack.c.l.b16 %v569
        %v609 = vunpack.c.l.b16 %v570
        %v610 = vunpack.c.l.b16 %v571
        %v611 = vpack.c.b16 %v596, %v595
        %v612 = vpack.c.b16 %v598, %v597
        %v613 = vpack.c.b16 %v600, %v599
        %v614 = vpack.c.b16 %v602, %v601
        %v615 = vpack.c.b16 %v604, %v603
        %v616 = vpack.c.b16 %v606, %v605
        %v617 = vpack.c.b16 %v608, %v607
        %v618 = vpack.c.b16 %v610, %v609
        %627 = vmatprep.subr.bf16.mxu0 0
        %628 = vmatpush1.bf16.msra.mxu0 %v611
        %629 = vmatprep.subr.bf16.mxu0 0
        %630 = vmatpush1.bf16.msra.mxu0 %v612
        %631 = vmatprep.subr.bf16.mxu0 0
        %632 = vmatpush1.bf16.msra.mxu0 %v613
        %633 = vmatprep.subr.bf16.mxu0 0
        %634 = vmatpush1.bf16.msra.mxu0 %v614
        %635 = vmatprep.subr.bf16.mxu0 0
        %636 = vmatpush1.bf16.msra.mxu0 %v615
        %637 = vmatprep.subr.bf16.mxu0 0
        %638 = vmatpush1.bf16.msra.mxu0 %v616
        %639 = vmatprep.subr.bf16.mxu0 0
        %640 = vmatpush1.bf16.msra.mxu0 %v617
        %641 = vmatprep.subr.bf16.mxu0 0
        %642 = vmatpush1.bf16.msra.mxu0 %v618
        %643 = vmatprep.subr.bf16.mxu0 0
        %644 = vmatpush1.bf16.msra.mxu0 0
        %645 = vmatprep.subr.bf16.mxu0 0
        %646 = vmatpush1.bf16.msra.mxu0 0
        %647 = vmatprep.subr.bf16.mxu0 0
        %648 = vmatpush1.bf16.msra.mxu0 0
        %649 = vmatprep.subr.bf16.mxu0 0
        %650 = vmatpush1.bf16.msra.mxu0 0
        %651 = vmatprep.subr.bf16.mxu0 0
        %652 = vmatpush1.bf16.msra.mxu0 0
        %653 = vmatprep.subr.bf16.mxu0 0
        %654 = vmatpush1.bf16.msra.mxu0 0
        %655 = vmatprep.subr.bf16.mxu0 0
        %656 = vmatpush1.bf16.msra.mxu0 0
        %657 = vmatprep.subr.bf16.mxu0 0
        %658 = vmatpush1.bf16.msra.mxu0 0
        %659 = vmatprep.mubr.bf16.mxu0 0
        %660 = vmatmul.mubr.bf16.gmra.mrb[0].mxu0 %v548
        %v661 = vpop.f32.mrb[0].mxu0
        %v662 = vadd.f32 %v577, %v661
        %v663 = vpop.f32.mrb[0].mxu0
        %v664 = vpop.f32.mrb[0].mxu0
        %v665 = vadd.f32 %v577, %v664
        %v666 = vpop.f32.mrb[0].mxu0
        %667 = vmatprep.mubr.bf16.mxu0 0
        %668 = vmatmul.mubr.bf16.gmra.mrb[0].mxu0 %v549
        %v669 = vpop.f32.mrb[0].mxu0
        %v670 = vadd.f32 %v577, %v669
        %v671 = vpop.f32.mrb[0].mxu0
        %v672 = vpop.f32.mrb[0].mxu0
        %v673 = vadd.f32 %v577, %v672
        %v674 = vpop.f32.mrb[0].mxu0
        %675 = vmatprep.mubr.bf16.mxu0 0
        %676 = vmatmul.mubr.bf16.gmra.mrb[0].mxu0 %v550
        %v677 = vpop.f32.mrb[0].mxu0
        %v678 = vadd.f32 %v577, %v677
        %v679 = vpop.f32.mrb[0].mxu0
        %v680 = vpop.f32.mrb[0].mxu0
        %v681 = vadd.f32 %v577, %v680
        %v682 = vpop.f32.mrb[0].mxu0
        %683 = vmatprep.mubr.bf16.mxu0 0
        %684 = vmatmul.mubr.bf16.gmra.mrb[0].mxu0 %v551
        %v685 = vpop.f32.mrb[0].mxu0
        %v686 = vadd.f32 %v577, %v685
        %v687 = vpop.f32.mrb[0].mxu0
        %v688 = vpop.f32.mrb[0].mxu0
        %v689 = vadd.f32 %v577, %v688
        %v690 = vpop.f32.mrb[0].mxu0
        %691 = vmatprep.mubr.bf16.mxu0 0
        %692 = vmatmul.mubr.bf16.gmra.mrb[0].mxu0 %v552
        %v693 = vpop.f32.mrb[0].mxu0
        %v694 = vadd.f32 %v577, %v693
        %v695 = vpop.f32.mrb[0].mxu0
        %v696 = vpop.f32.mrb[0].mxu0
        %v697 = vadd.f32 %v577, %v696
        %v698 = vpop.f32.mrb[0].mxu0
        %699 = vmatprep.mubr.bf16.mxu0 0
        %700 = vmatmul.mubr.bf16.gmra.mrb[0].mxu0 %v553
        %v701 = vpop.f32.mrb[0].mxu0
        %v702 = vadd.f32 %v577, %v701
        %v703 = vpop.f32.mrb[0].mxu0
        %v704 = vpop.f32.mrb[0].mxu0
        %v705 = vadd.f32 %v577, %v704
        %v706 = vpop.f32.mrb[0].mxu0
        %707 = vmatprep.mubr.bf16.mxu0 0
        %708 = vmatmul.mubr.bf16.gmra.mrb[0].mxu0 %v554
        %v709 = vpop.f32.mrb[0].mxu0
        %v710 = vadd.f32 %v577, %v709
        %v711 = vpop.f32.mrb[0].mxu0
        %v712 = vpop.f32.mrb[0].mxu0
        %v713 = vadd.f32 %v577, %v712
        %v714 = vpop.f32.mrb[0].mxu0
        %715 = vmatprep.mubr.bf16.mxu0 0
        %716 = vmatmul.mubr.bf16.gmra.mrb[0].mxu0 %v555
        %v717 = vpop.f32.mrb[0].mxu0
        %v718 = vadd.f32 %v577, %v717
        %v719 = vpop.f32.mrb[0].mxu0
        %v720 = vpop.f32.mrb[0].mxu0
        %v721 = vadd.f32 %v577, %v720
        %v722 = vpop.f32.mrb[0].mxu0
        %723 = vdwg.mxu0
        %724 = vst [vmem:[%s342] sm:$0xff] %v662
        %725 = vst [vmem:[%s342 + $0x8] sm:$0xff] %v665
        %726 = vst [vmem:[%s342 + $0x10] sm:$0xff] %v670
        %727 = vst [vmem:[%s342 + $0x18] sm:$0xff] %v673
        %728 = vst [vmem:[%s342 + $0x20] sm:$0xff] %v678
        %729 = vst [vmem:[%s342 + $0x28] sm:$0xff] %v681
        %730 = vst [vmem:[%s342 + $0x30] sm:$0xff] %v686
        %731 = vst [vmem:[%s342 + $0x38] sm:$0xff] %v689
        %732 = vst [vmem:[%s342 + $0x40] sm:$0xff] %v694
        %733 = vst [vmem:[%s342 + $0x48] sm:$0xff] %v697
        %734 = vst [vmem:[%s342 + $0x50] sm:$0xff] %v702
        %735 = vst [vmem:[%s342 + $0x58] sm:$0xff] %v705
        %736 = vst [vmem:[%s342 + $0x60] sm:$0xff] %v710
        %737 = vst [vmem:[%s342 + $0x68] sm:$0xff] %v713
        %738 = vst [vmem:[%s342 + $0x70] sm:$0xff] %v718
        %739 = vst [vmem:[%s342 + $0x78] sm:$0xff] %v721
        %v740 = vld [vmem:[%s303] sm:$0xff]
        %v741 = vld [vmem:[%s303 + $0x8] sm:$0xff]
        %v742 = vld [vmem:[%s303 + $0x10] sm:$0xff]
        %v743 = vld [vmem:[%s303 + $0x18] sm:$0xff]
        %v744 = vld [vmem:[%s303 + $0x20] sm:$0xff]
        %v745 = vld [vmem:[%s303 + $0x28] sm:$0xff]
        %v746 = vld [vmem:[%s303 + $0x30] sm:$0xff]
        %v747 = vld [vmem:[%s303 + $0x38] sm:$0xff]
        %v748 = vld [vmem:[%s303 + $0x40] sm:$0xff]
        %v749 = vld [vmem:[%s303 + $0x48] sm:$0xff]
        %v750 = vld [vmem:[%s303 + $0x50] sm:$0xff]
        %v751 = vld [vmem:[%s303 + $0x58] sm:$0xff]
        %v752 = vld [vmem:[%s303 + $0x60] sm:$0xff]
        %v753 = vld [vmem:[%s303 + $0x68] sm:$0xff]
        %v754 = vld [vmem:[%s303 + $0x70] sm:$0xff]
        %v755 = vld [vmem:[%s303 + $0x78] sm:$0xff]
        %756 = vadd.xlane.f32.xlu0 %v740
        %v757 = vpop.xlane.xlu0 %756
        %758 = vadd.xlane.f32.xlu0 %v741
        %v759 = vpop.xlane.xlu0 %758
        %760 = vadd.xlane.f32.xlu0 %v742
        %v761 = vpop.xlane.xlu0 %760
        %762 = vadd.xlane.f32.xlu0 %v743
        %v763 = vpop.xlane.xlu0 %762
        %764 = vadd.xlane.f32.xlu0 %v744
        %v765 = vpop.xlane.xlu0 %764
        %766 = vadd.xlane.f32.xlu0 %v745
        %v767 = vpop.xlane.xlu0 %766
        %768 = vadd.xlane.f32.xlu0 %v746
        %v769 = vpop.xlane.xlu0 %768
        %770 = vadd.xlane.f32.xlu0 %v747
        %v771 = vpop.xlane.xlu0 %770
        %772 = vadd.xlane.f32.xlu0 %v748
        %v773 = vpop.xlane.xlu0 %772
        %774 = vadd.xlane.f32.xlu0 %v749
        %v775 = vpop.xlane.xlu0 %774
        %776 = vadd.xlane.f32.xlu0 %v750
        %v777 = vpop.xlane.xlu0 %776
        %778 = vadd.xlane.f32.xlu0 %v751
        %v779 = vpop.xlane.xlu0 %778
        %780 = vadd.xlane.f32.xlu0 %v752
        %v781 = vpop.xlane.xlu0 %780
        %782 = vadd.xlane.f32.xlu0 %v753
        %v783 = vpop.xlane.xlu0 %782
        %784 = vadd.xlane.f32.xlu0 %v754
        %v785 = vpop.xlane.xlu0 %784
        %786 = vadd.xlane.f32.xlu0 %v755
        %v787 = vpop.xlane.xlu0 %786
        %v788 = vmul.f32 %v757, %v403
        %v789 = vmul.f32 %v759, %v403
        %v790 = vmul.f32 %v761, %v403
        %v791 = vmul.f32 %v763, %v403
        %v792 = vmul.f32 %v765, %v403
        %v793 = vmul.f32 %v767, %v403
        %v794 = vmul.f32 %v769, %v403
        %v795 = vmul.f32 %v771, %v403
        %v796 = vmul.f32 %v773, %v403
        %v797 = vmul.f32 %v775, %v403
        %v798 = vmul.f32 %v777, %v403
        %v799 = vmul.f32 %v779, %v403
        %v800 = vmul.f32 %v781, %v403
        %v801 = vmul.f32 %v783, %v403
        %v802 = vmul.f32 %v785, %v403
        %v803 = vmul.f32 %v787, %v403
        %v804 = vsub.f32 %v740, %v788
        %v805 = vsub.f32 %v741, %v789
        %v806 = vsub.f32 %v742, %v790
        %v807 = vsub.f32 %v743, %v791
        %v808 = vsub.f32 %v744, %v792
        %v809 = vsub.f32 %v745, %v793
        %v810 = vsub.f32 %v746, %v794
        %v811 = vsub.f32 %v747, %v795
        %v812 = vsub.f32 %v748, %v796
        %v813 = vsub.f32 %v749, %v797
        %v814 = vsub.f32 %v750, %v798
        %v815 = vsub.f32 %v751, %v799
        %v816 = vsub.f32 %v752, %v800
        %v817 = vsub.f32 %v753, %v801
        %v818 = vsub.f32 %v754, %v802
        %v819 = vsub.f32 %v755, %v803
        %v820 = vmul.f32 %v804, %v804
        %v821 = vmul.f32 %v805, %v805
        %v822 = vmul.f32 %v806, %v806
        %v823 = vmul.f32 %v807, %v807
        %v824 = vmul.f32 %v808, %v808
        %v825 = vmul.f32 %v809, %v809
        %v826 = vmul.f32 %v810, %v810
        %v827 = vmul.f32 %v811, %v811
        %v828 = vmul.f32 %v812, %v812
        %v829 = vmul.f32 %v813, %v813
        %v830 = vmul.f32 %v814, %v814
        %v831 = vmul.f32 %v815, %v815
        %v832 = vmul.f32 %v816, %v816
        %v833 = vmul.f32 %v817, %v817
        %v834 = vmul.f32 %v818, %v818
        %v835 = vmul.f32 %v819, %v819
        %836 = vadd.xlane.f32.xlu0 %v820
        %v837 = vpop.xlane.xlu0 %836
        %838 = vadd.xlane.f32.xlu0 %v821
        %v839 = vpop.xlane.xlu0 %838
        %840 = vadd.xlane.f32.xlu0 %v822
        %v841 = vpop.xlane.xlu0 %840
        %842 = vadd.xlane.f32.xlu0 %v823
        %v843 = vpop.xlane.xlu0 %842
        %844 = vadd.xlane.f32.xlu0 %v824
        %v845 = vpop.xlane.xlu0 %844
        %846 = vadd.xlane.f32.xlu0 %v825
        %v847 = vpop.xlane.xlu0 %846
        %848 = vadd.xlane.f32.xlu0 %v826
        %v849 = vpop.xlane.xlu0 %848
        %850 = vadd.xlane.f32.xlu0 %v827
        %v851 = vpop.xlane.xlu0 %850
        %852 = vadd.xlane.f32.xlu0 %v828
        %v853 = vpop.xlane.xlu0 %852
        %854 = vadd.xlane.f32.xlu0 %v829
        %v855 = vpop.xlane.xlu0 %854
        %856 = vadd.xlane.f32.xlu0 %v830
        %v857 = vpop.xlane.xlu0 %856
        %858 = vadd.xlane.f32.xlu0 %v831
        %v859 = vpop.xlane.xlu0 %858
        %860 = vadd.xlane.f32.xlu0 %v832
        %v861 = vpop.xlane.xlu0 %860
        %862 = vadd.xlane.f32.xlu0 %v833
        %v863 = vpop.xlane.xlu0 %862
        %864 = vadd.xlane.f32.xlu0 %v834
        %v865 = vpop.xlane.xlu0 %864
        %866 = vadd.xlane.f32.xlu0 %v835
        %v867 = vpop.xlane.xlu0 %866
        %v868 = vmul.f32 %v837, %v403
        %v869 = vmul.f32 %v839, %v403
        %v870 = vmul.f32 %v841, %v403
        %v871 = vmul.f32 %v843, %v403
        %v872 = vmul.f32 %v845, %v403
        %v873 = vmul.f32 %v847, %v403
        %v874 = vmul.f32 %v849, %v403
        %v875 = vmul.f32 %v851, %v403
        %v876 = vmul.f32 %v853, %v403
        %v877 = vmul.f32 %v855, %v403
        %v878 = vmul.f32 %v857, %v403
        %v879 = vmul.f32 %v859, %v403
        %v880 = vmul.f32 %v861, %v403
        %v881 = vmul.f32 %v863, %v403
        %v882 = vmul.f32 %v865, %v403
        %v883 = vmul.f32 %v867, %v403
        %v884 = vadd.f32 %v868, 1e-05
        %v885 = vadd.f32 %v869, 1e-05
        %v886 = vadd.f32 %v870, 1e-05
        %v887 = vadd.f32 %v871, 1e-05
        %v888 = vadd.f32 %v872, 1e-05
        %v889 = vadd.f32 %v873, 1e-05
        %v890 = vadd.f32 %v874, 1e-05
        %v891 = vadd.f32 %v875, 1e-05
        %v892 = vadd.f32 %v876, 1e-05
        %v893 = vadd.f32 %v877, 1e-05
        %v894 = vadd.f32 %v878, 1e-05
        %v895 = vadd.f32 %v879, 1e-05
        %v896 = vadd.f32 %v880, 1e-05
        %v897 = vadd.f32 %v881, 1e-05
        %v898 = vadd.f32 %v882, 1e-05
        %v899 = vadd.f32 %v883, 1e-05
        %v900 = vrsqrt.pop %v884
        %v901 = vrsqrt.pop %v885
        %v902 = vrsqrt.pop %v886
        %v903 = vrsqrt.pop %v887
        %v904 = vrsqrt.pop %v888
        %v905 = vrsqrt.pop %v889
        %v906 = vrsqrt.pop %v890
        %v907 = vrsqrt.pop %v891
        %v908 = vrsqrt.pop %v892
        %v909 = vrsqrt.pop %v893
        %v910 = vrsqrt.pop %v894
        %v911 = vrsqrt.pop %v895
        %v912 = vrsqrt.pop %v896
        %v913 = vrsqrt.pop %v897
        %v914 = vrsqrt.pop %v898
        %v915 = vrsqrt.pop %v899
        %v916 = vmul.f32 %v804, %v900
        %v917 = vmul.f32 %v805, %v901
        %v918 = vmul.f32 %v806, %v902
        %v919 = vmul.f32 %v807, %v903
        %v920 = vmul.f32 %v808, %v904
        %v921 = vmul.f32 %v809, %v905
        %v922 = vmul.f32 %v810, %v906
        %v923 = vmul.f32 %v811, %v907
        %v924 = vmul.f32 %v812, %v908
        %v925 = vmul.f32 %v813, %v909
        %v926 = vmul.f32 %v814, %v910
        %v927 = vmul.f32 %v815, %v911
        %v928 = vmul.f32 %v816, %v912
        %v929 = vmul.f32 %v817, %v913
        %v930 = vmul.f32 %v818, %v914
        %v931 = vmul.f32 %v819, %v915
        %v932 = vpack.c.bf16 %v917, %v916
        %v933 = vpack.c.bf16 %v919, %v918
        %v934 = vpack.c.bf16 %v921, %v920
        %v935 = vpack.c.bf16 %v923, %v922
        %v936 = vpack.c.bf16 %v925, %v924
        %v937 = vpack.c.bf16 %v927, %v926
        %v938 = vpack.c.bf16 %v929, %v928
        %v939 = vpack.c.bf16 %v931, %v930
        %v940 = vld [vmem:[#allocation8] sm:$0xff]
        %v941 = vld [vmem:[#allocation8 + $0x8] sm:$0xff]
        %v942 = vld [vmem:[#allocation8 + $0x10] sm:$0xff]
        %v943 = vld [vmem:[#allocation8 + $0x18] sm:$0xff]
        %v944 = vld [vmem:[#allocation8 + $0x20] sm:$0xff]
        %v945 = vld [vmem:[#allocation8 + $0x28] sm:$0xff]
        %v946 = vld [vmem:[#allocation8 + $0x30] sm:$0xff]
        %v947 = vld [vmem:[#allocation8 + $0x38] sm:$0xff]
        %v948 = vld [vmem:[#allocation8 + $0x40] sm:$0xff]
        %v949 = vld [vmem:[#allocation8 + $0x48] sm:$0xff]
        %v950 = vld [vmem:[#allocation8 + $0x50] sm:$0xff]
        %v951 = vld [vmem:[#allocation8 + $0x58] sm:$0xff]
        %v952 = vld [vmem:[#allocation8 + $0x60] sm:$0xff]
        %v953 = vld [vmem:[#allocation8 + $0x68] sm:$0xff]
        %v954 = vld [vmem:[#allocation8 + $0x70] sm:$0xff]
        %v955 = vld [vmem:[#allocation8 + $0x78] sm:$0xff]
        %v972 = vunpack.c.l.b16 %v940
        %v973 = vunpack.c.h.b16 %v940
        %v974 = vunpack.c.l.b16 %v941
        %v975 = vunpack.c.h.b16 %v941
        %v976 = vunpack.c.l.b16 %v942
        %v977 = vunpack.c.h.b16 %v942
        %v978 = vunpack.c.l.b16 %v943
        %v979 = vunpack.c.h.b16 %v943
        %v980 = vunpack.c.l.b16 %v944
        %v981 = vunpack.c.h.b16 %v944
        %v982 = vunpack.c.l.b16 %v945
        %v983 = vunpack.c.h.b16 %v945
        %v984 = vunpack.c.l.b16 %v946
        %v985 = vunpack.c.h.b16 %v946
        %v986 = vunpack.c.l.b16 %v947
        %v987 = vunpack.c.h.b16 %v947
        %v988 = vunpack.c.l.b16 %v948
        %v989 = vunpack.c.h.b16 %v948
        %v990 = vunpack.c.l.b16 %v949
        %v991 = vunpack.c.h.b16 %v949
        %v992 = vunpack.c.l.b16 %v950
        %v993 = vunpack.c.h.b16 %v950
        %v994 = vunpack.c.l.b16 %v951
        %v995 = vunpack.c.h.b16 %v951
        %v996 = vunpack.c.l.b16 %v952
        %v997 = vunpack.c.h.b16 %v952
        %v998 = vunpack.c.l.b16 %v953
        %v999 = vunpack.c.h.b16 %v953
        %v1000 = vunpack.c.l.b16 %v954
        %v1001 = vunpack.c.h.b16 %v954
        %v1002 = vunpack.c.l.b16 %v955
        %v1003 = vunpack.c.h.b16 %v955
        %v1004 = vpack.c.b16 %v974, %v972
        %v1005 = vpack.c.b16 %v975, %v973
        %v1006 = vpack.c.b16 %v978, %v976
        %v1007 = vpack.c.b16 %v979, %v977
        %v1008 = vpack.c.b16 %v982, %v980
        %v1009 = vpack.c.b16 %v983, %v981
        %v1010 = vpack.c.b16 %v986, %v984
        %v1011 = vpack.c.b16 %v987, %v985
        %v1012 = vpack.c.b16 %v990, %v988
        %v1013 = vpack.c.b16 %v991, %v989
        %v1014 = vpack.c.b16 %v994, %v992
        %v1015 = vpack.c.b16 %v995, %v993
        %v1016 = vpack.c.b16 %v998, %v996
        %v1017 = vpack.c.b16 %v999, %v997
        %v1018 = vpack.c.b16 %v1002, %v1000
        %v1019 = vpack.c.b16 %v1003, %v1001
        %1036 = vmatprep.subr.bf16.mxu0 %v1005
        %1037 = vmatpush1.bf16.msra.mxu0 %v1004
        %1038 = vmatprep.subr.bf16.mxu0 %v1007
        %1039 = vmatpush1.bf16.msra.mxu0 %v1006
        %1040 = vmatprep.subr.bf16.mxu0 %v1009
        %1041 = vmatpush1.bf16.msra.mxu0 %v1008
        %1042 = vmatprep.subr.bf16.mxu0 %v1011
        %1043 = vmatpush1.bf16.msra.mxu0 %v1010
        %1044 = vmatprep.subr.bf16.mxu0 %v1013
        %1045 = vmatpush1.bf16.msra.mxu0 %v1012
        %1046 = vmatprep.subr.bf16.mxu0 %v1015
        %1047 = vmatpush1.bf16.msra.mxu0 %v1014
        %1048 = vmatprep.subr.bf16.mxu0 %v1017
        %1049 = vmatpush1.bf16.msra.mxu0 %v1016
        %1050 = vmatprep.subr.bf16.mxu0 %v1019
        %1051 = vmatpush1.bf16.msra.mxu0 %v1018
        %1052 = vmatprep.subr.bf16.mxu0 0
        %1053 = vmatpush1.bf16.msra.mxu0 0
        %1054 = vmatprep.subr.bf16.mxu0 0
        %1055 = vmatpush1.bf16.msra.mxu0 0
        %1056 = vmatprep.subr.bf16.mxu0 0
        %1057 = vmatpush1.bf16.msra.mxu0 0
        %1058 = vmatprep.subr.bf16.mxu0 0
        %1059 = vmatpush1.bf16.msra.mxu0 0
        %1060 = vmatprep.subr.bf16.mxu0 0
        %1061 = vmatpush1.bf16.msra.mxu0 0
        %1062 = vmatprep.subr.bf16.mxu0 0
        %1063 = vmatpush1.bf16.msra.mxu0 0
        %1064 = vmatprep.subr.bf16.mxu0 0
        %1065 = vmatpush1.bf16.msra.mxu0 0
        %1066 = vmatprep.subr.bf16.mxu0 0
        %1067 = vmatpush1.bf16.msra.mxu0 0
        %1068 = vmatprep.mubr.bf16.mxu0 0
        %1069 = vmatmul.mubr.bf16.gmra.mrb[0].mxu0 %v932
        %v1070 = vpop.f32.mrb[0].mxu0
        %v1071 = vadd.f32 0.0, %v1070
        %v1072 = vpop.f32.mrb[0].mxu0
        %v1073 = vadd.f32 0.0, %v1072
        %v1074 = vpop.f32.mrb[0].mxu0
        %v1075 = vadd.f32 0.0, %v1074
        %v1076 = vpop.f32.mrb[0].mxu0
        %v1077 = vadd.f32 0.0, %v1076
        %1078 = vmatprep.mubr.bf16.mxu0 0
        %1079 = vmatmul.mubr.bf16.gmra.mrb[0].mxu0 %v933
        %v1080 = vpop.f32.mrb[0].mxu0
        %v1081 = vadd.f32 0.0, %v1080
        %v1082 = vpop.f32.mrb[0].mxu0
        %v1083 = vadd.f32 0.0, %v1082
        %v1084 = vpop.f32.mrb[0].mxu0
        %v1085 = vadd.f32 0.0, %v1084
        %v1086 = vpop.f32.mrb[0].mxu0
        %v1087 = vadd.f32 0.0, %v1086
        %1088 = vmatprep.mubr.bf16.mxu0 0
        %1089 = vmatmul.mubr.bf16.gmra.mrb[0].mxu0 %v934
        %v1090 = vpop.f32.mrb[0].mxu0
        %v1091 = vadd.f32 0.0, %v1090
        %v1092 = vpop.f32.mrb[0].mxu0
        %v1093 = vadd.f32 0.0, %v1092
        %v1094 = vpop.f32.mrb[0].mxu0
        %v1095 = vadd.f32 0.0, %v1094
        %v1096 = vpop.f32.mrb[0].mxu0
        %v1097 = vadd.f32 0.0, %v1096
        %1098 = vmatprep.mubr.bf16.mxu0 0
        %1099 = vmatmul.mubr.bf16.gmra.mrb[0].mxu0 %v935
        %v1100 = vpop.f32.mrb[0].mxu0
        %v1101 = vadd.f32 0.0, %v1100
        %v1102 = vpop.f32.mrb[0].mxu0
        %v1103 = vadd.f32 0.0, %v1102
        %v1104 = vpop.f32.mrb[0].mxu0
        %v1105 = vadd.f32 0.0, %v1104
        %v1106 = vpop.f32.mrb[0].mxu0
        %v1107 = vadd.f32 0.0, %v1106
        %1108 = vmatprep.mubr.bf16.mxu0 0
        %1109 = vmatmul.mubr.bf16.gmra.mrb[0].mxu0 %v936
        %v1110 = vpop.f32.mrb[0].mxu0
        %v1111 = vadd.f32 0.0, %v1110
        %v1112 = vpop.f32.mrb[0].mxu0
        %v1113 = vadd.f32 0.0, %v1112
        %v1114 = vpop.f32.mrb[0].mxu0
        %v1115 = vadd.f32 0.0, %v1114
        %v1116 = vpop.f32.mrb[0].mxu0
        %v1117 = vadd.f32 0.0, %v1116
        %1118 = vmatprep.mubr.bf16.mxu0 0
        %1119 = vmatmul.mubr.bf16.gmra.mrb[0].mxu0 %v937
        %v1120 = vpop.f32.mrb[0].mxu0
        %v1121 = vadd.f32 0.0, %v1120
        %v1122 = vpop.f32.mrb[0].mxu0
        %v1123 = vadd.f32 0.0, %v1122
        %v1124 = vpop.f32.mrb[0].mxu0
        %v1125 = vadd.f32 0.0, %v1124
        %v1126 = vpop.f32.mrb[0].mxu0
        %v1127 = vadd.f32 0.0, %v1126
        %1128 = vmatprep.mubr.bf16.mxu0 0
        %1129 = vmatmul.mubr.bf16.gmra.mrb[0].mxu0 %v938
        %v1130 = vpop.f32.mrb[0].mxu0
        %v1131 = vadd.f32 0.0, %v1130
        %v1132 = vpop.f32.mrb[0].mxu0
        %v1133 = vadd.f32 0.0, %v1132
        %v1134 = vpop.f32.mrb[0].mxu0
        %v1135 = vadd.f32 0.0, %v1134
        %v1136 = vpop.f32.mrb[0].mxu0
        %v1137 = vadd.f32 0.0, %v1136
        %1138 = vmatprep.mubr.bf16.mxu0 0
        %1139 = vmatmul.mubr.bf16.gmra.mrb[0].mxu0 %v939
        %v1140 = vpop.f32.mrb[0].mxu0
        %v1141 = vadd.f32 0.0, %v1140
        %v1142 = vpop.f32.mrb[0].mxu0
        %v1143 = vadd.f32 0.0, %v1142
        %v1144 = vpop.f32.mrb[0].mxu0
        %v1145 = vadd.f32 0.0, %v1144
        %v1146 = vpop.f32.mrb[0].mxu0
        %v1147 = vadd.f32 0.0, %v1146
        %1148 = vdwg.mxu0
        %1149 = vst [vmem:[%s349] sm:$0xff] %v1071
        %1150 = vst [vmem:[%s349 + $0x8] sm:$0xff] %v1073
        %1151 = vst [vmem:[%s349 + $0x10] sm:$0xff] %v1075
        %1152 = vst [vmem:[%s349 + $0x18] sm:$0xff] %v1077
        %1153 = vst [vmem:[%s349 + $0x20] sm:$0xff] %v1081
        %1154 = vst [vmem:[%s349 + $0x28] sm:$0xff] %v1083
        %1155 = vst [vmem:[%s349 + $0x30] sm:$0xff] %v1085
        %1156 = vst [vmem:[%s349 + $0x38] sm:$0xff] %v1087
        %1157 = vst [vmem:[%s349 + $0x40] sm:$0xff] %v1091
        %1158 = vst [vmem:[%s349 + $0x48] sm:$0xff] %v1093
        %1159 = vst [vmem:[%s349 + $0x50] sm:$0xff] %v1095
        %1160 = vst [vmem:[%s349 + $0x58] sm:$0xff] %v1097
        %1161 = vst [vmem:[%s349 + $0x60] sm:$0xff] %v1101
        %1162 = vst [vmem:[%s349 + $0x68] sm:$0xff] %v1103
        %1163 = vst [vmem:[%s349 + $0x70] sm:$0xff] %v1105
        %1164 = vst [vmem:[%s349 + $0x78] sm:$0xff] %v1107
        %1165 = vst [vmem:[%s349 + $0x80] sm:$0xff] %v1111
        %1166 = vst [vmem:[%s349 + $0x88] sm:$0xff] %v1113
        %1167 = vst [vmem:[%s349 + $0x90] sm:$0xff] %v1115
        %1168 = vst [vmem:[%s349 + $0x98] sm:$0xff] %v1117
        %1169 = vst [vmem:[%s349 + $0xa0] sm:$0xff] %v1121
        %1170 = vst [vmem:[%s349 + $0xa8] sm:$0xff] %v1123
        %1171 = vst [vmem:[%s349 + $0xb0] sm:$0xff] %v1125
        %1172 = vst [vmem:[%s349 + $0xb8] sm:$0xff] %v1127
        %1173 = vst [vmem:[%s349 + $0xc0] sm:$0xff] %v1131
        %1174 = vst [vmem:[%s349 + $0xc8] sm:$0xff] %v1133
        %1175 = vst [vmem:[%s349 + $0xd0] sm:$0xff] %v1135
        %1176 = vst [vmem:[%s349 + $0xd8] sm:$0xff] %v1137
        %1177 = vst [vmem:[%s349 + $0xe0] sm:$0xff] %v1141
        %1178 = vst [vmem:[%s349 + $0xe8] sm:$0xff] %v1143
        %1179 = vst [vmem:[%s349 + $0xf0] sm:$0xff] %v1145
        %1180 = vst [vmem:[%s349 + $0xf8] sm:$0xff] %v1147
        %s1181 = sand.u32 %s154, 1
        %s1182 = scalar_lea.sflag [#allocation4], %s1181
        %s1183 = sand.u32 %s154, 1
        %s1184 = smul.addr %s1183, 128
        %s1185 = scalar_lea.vmem [#allocation10], %s1184
        %s1186 = sand.u32 %s180, 1
        %s1187 = scalar_lea.sflag [#allocation12], %s1186
        %s1188 = sand.u32 %s180, 1
        %s1189 = smul.addr %s1188, 256
        %s1190 = scalar_lea.vmem [#allocation11], %s1189
        // Predicated region
        $region57: #{tpu_custom_call.1} parent=39 // pred_check
          %p1191 = pneg %p164
        $region58: #{tpu_custom_call.1} parent=39 // pred_check_branch
          %1193 = sbr.rel (%p1191) target = $region60
        $region59: #{tpu_custom_call.1} parent=39 // pred_region
          %s1194 = smul.u32 16, %s31
          %s1196 = ssub.s32 2048, 2048
          %1197 = vsyncadd %s1182, %s1196
          %s1198 = smul.addr %s1194, 128
          %s1199 = scalar_lea.hbm %s5, %s1198
          %s1200 = sshll.u32 %s1185, 4
          %s1201 = int_to_ptr.vmem [resolvable:$true] %s1200
          %1206 = dma.vmem_to_hbm [thread:$0]  %s1201, 2048, %s1199, %s1182, 128, 128, 8
        $region60: #{tpu_custom_call.1} parent=39 // pred_fallthru
          _
        // Predicated region
        $region61: #{tpu_custom_call.1} parent=39 // pred_check
          %p1207 = pneg %p190
        $region62: #{tpu_custom_call.1} parent=39 // pred_check_branch
          %1209 = sbr.rel (%p1207) target = $region64
        $region63: #{tpu_custom_call.1} parent=39 // pred_region
          %s1210 = smul.u32 16, %s31
          %s1212 = ssub.s32 4096, 4096
          %1213 = vsyncadd %s1187, %s1212
          %s1214 = smul.addr %s1210, 2
          %s1215 = smul.addr %s1214, 128
          %s1216 = scalar_lea.hbm %s6, %s1215
          %s1217 = sshll.u32 %s1190, 4
          %s1218 = int_to_ptr.vmem [resolvable:$true] %s1217
          %1223 = dma.vmem_to_hbm [thread:$0]  %s1218, 4096, %s1216, %s1187, 256, 256, 16
        $region64: #{tpu_custom_call.1} parent=39 // pred_fallthru
          _
      $region40: #{tpu_custom_call.1} parent=5 // pred_fallthru
        _
      %p1224 = scmp.le.s32.totalorder 2, %s26
      // Predicated region
      $region65: #{tpu_custom_call.1} parent=5 // pred_check
        %p1225 = pneg %p1224
      $region66: #{tpu_custom_call.1} parent=5 // pred_check_branch
        %1227 = sbr.rel (%p1225) target = $region68
      $region67: #{tpu_custom_call.1} parent=5 // pred_region
        %s1228 = ssub.s32 %s26, 2
        // Predicated region
        $region69: #{tpu_custom_call.1} parent=67 // pred_check
          %p1229 = pneg %p170
        $region70: #{tpu_custom_call.1} parent=67 // pred_check_branch
          %1231 = sbr.rel (%p1229) target = $region72
        $region71: #{tpu_custom_call.1} parent=67 // pred_region
          %s1232 = sand.u32 %s155, 1
          %s1233 = scalar_lea.sflag [#allocation4], %s1232
          %s1234 = sand.u32 %s155, 1
          %s1235 = smul.addr %s1234, 128
          %s1236 = scalar_lea.vmem [#allocation10], %s1235
          %1237 = dma.done %s1233, 2048
        $region72: #{tpu_custom_call.1} parent=67 // pred_fallthru
          _
        // Predicated region
        $region73: #{tpu_custom_call.1} parent=67 // pred_check
          %p1238 = pneg %p196
        $region74: #{tpu_custom_call.1} parent=67 // pred_check_branch
          %1240 = sbr.rel (%p1238) target = $region76
        $region75: #{tpu_custom_call.1} parent=67 // pred_region
          %s1241 = sand.u32 %s181, 1
          %s1242 = scalar_lea.sflag [#allocation12], %s1241
          %s1243 = sand.u32 %s181, 1
          %s1244 = smul.addr %s1243, 256
          %s1245 = scalar_lea.vmem [#allocation11], %s1244
          %1246 = dma.done %s1242, 4096
        $region76: #{tpu_custom_call.1} parent=67 // pred_fallthru
          _
      $region68: #{tpu_custom_call.1} parent=5 // pred_fallthru
        _
    $region6: #{tpu_custom_call.1} parent=1 // loop_footer
      %s30 = sadd.s32 1, %s26
    $region7: #{tpu_custom_call.1} parent=1 // loop_footer_branch
      %25 = sbr.rel target = $region3
    $region8: #{tpu_custom_call.1} parent=1 // loop_exit
      _
    %1247 = vsyncpa [#allocation3], 1
    %s1248 = scalar_lea.sflag [#allocation3], 1
    %1249 = vsyncpa %s1248, 1
    %1250 = vsyncpa [#allocation6], 1
    %s1251 = scalar_lea.sflag [#allocation6], 1
    %1252 = vsyncpa %s1251, 1
    %1253 = vsyncpa [#allocation9], 1
    %1254 = vsyncpa [#allocation4], 1
    %s1255 = scalar_lea.sflag [#allocation4], 1
    %1256 = vsyncpa %s1255, 1
    %1257 = vsyncpa [#allocation12], 1
    %s1258 = scalar_lea.sflag [#allocation12], 1
    %1259 = vsyncpa %s1258, 1

</llo_original>
